<compile_context>
chip_gen: v7x
topology: tpu7x:2x2x1
jax: 0.10.0
libtpu: 0.0.40
codegen_flags: <defaults>
</compile_context>

<pallas_src>
import functools

import jax
import jax.numpy as jnp
import numpy as np
from jax.experimental import pallas as pl
from jax.experimental.pallas import tpu as pltpu

K = 7            # kernel_size
P = K // 2       # padding = 3
LANE = 128


def _round_up(n, m):
    return ((n + m - 1) // m) * m


def _largest_divisor(n, cap, quantum=1):
    """Largest multiple of `quantum` dividing n and <= cap (falls back to n)."""
    best = None
    t = quantum
    cap = min(cap, n)
    while t <= cap:
        if n % t == 0:
            best = t
        t += quantum
    return best if best is not None else n


def _pick_channel_tile(C, cap):
    """Channel tile that is either the full C or a multiple of 8 (8,128 rule)."""
    if C <= cap:
        return C
    best = None
    t = 8
    while t <= cap:
        if C % t == 0:
            best = t
        t += 8
    return best if best is not None else C


# ---------------------------------------------------------------------------
# Pass 1: attention map  = sigmoid(conv7x7([mean_c(x), max_c(x)]))
# ---------------------------------------------------------------------------
def _attention_map_kernel(x_ref, w_ref, attn_ref, acc_ref, pad_ref, shift_ref,
                          *, channels):
    # x_ref    : (1, TC, H, W)   VMEM  channel tile of one batch element
    # w_ref    : (2*K*K,)        SMEM  flattened OIHW conv weights (O=1)
    # attn_ref : (1, H, W)       VMEM  sigmoid(conv) (written on last channel tile)
    # acc_ref  : (2, H, W)       VMEM  running [channel-sum, channel-max]
    # pad_ref  : (2, H+2P, W+2P) VMEM  zero-padded [avg, max] maps
    # shift_ref: (H+2P, W)       VMEM  kj-lane-shifted copy of one padded channel
    ci = pl.program_id(1)
    nci = pl.num_programs(1)
    H = attn_ref.shape[1]
    W = attn_ref.shape[2]

    # Zero the padded-scratch border exactly once; the interior is fully
    # overwritten every time it is used and scratch persists across grid steps.
    @pl.when(jnp.logical_and(pl.program_id(0) == 0, ci == 0))
    def _():
        pad_ref[...] = jnp.zeros_like(pad_ref)

    @pl.when(ci == 0)
    def _():
        acc_ref[0] = jnp.zeros((H, W), jnp.float32)
        acc_ref[1] = jnp.full((H, W), -jnp.inf, jnp.float32)

    # Load the channel tile once and reuse it for both reductions.
    x = x_ref[0].astype(jnp.float32)                   # (TC, H, W)
    acc_ref[0] = acc_ref[0] + jnp.sum(x, axis=0)
    acc_ref[1] = jnp.maximum(acc_ref[1], jnp.max(x, axis=0))

    @pl.when(ci == nci - 1)
    def _():
        inv_c = jnp.float32(1.0 / channels)            # scalar mul, not a divide
        pad_ref[0, P:P + H, P:P + W] = acc_ref[0] * inv_c
        pad_ref[1, P:P + H, P:P + W] = acc_ref[1]

        conv = jnp.zeros((H, W), jnp.float32)
        for c in range(2):
            pad_c = pad_ref[c]                         # (H+2P, W+2P) value
            for kj in range(K):
                # One lane shift per (channel, kj): 14 total instead of 98.
                shift_ref[...] = pad_c[:, kj:kj + W]
                for ki in range(K):
                    wv = w_ref[c * K * K + ki * K + kj]        # SMEM scalar
                    # row-offset load from VMEM scratch + VPU FMA
                    conv = conv + wv * shift_ref[ki:ki + H, :]
        attn_ref[0] = jax.nn.sigmoid(conv)


def _attention_map(x, w_flat):
    B, C, H, W = x.shape
    # Channel tile: bounds per-step VMEM and gives the pipeline >1 step/batch.
    budget = 4 * 1024 * 1024
    tc_cap = max(1, budget // (H * W * x.dtype.itemsize))
    TC = _largest_divisor(C, tc_cap)
    grid = (B, C // TC)

    flops = 2 * B * C * H * W + 2 * B * H * W * 2 * K * K
    bytes_accessed = B * C * H * W * x.dtype.itemsize + B * H * W * 4

    kern = functools.partial(_attention_map_kernel, channels=C)
    return pl.pallas_call(
        kern,
        out_shape=jax.ShapeDtypeStruct((B, H, W), jnp.float32),
        grid_spec=pltpu.PrefetchScalarGridSpec(
            num_scalar_prefetch=0,
            grid=grid,
            in_specs=[
                pl.BlockSpec((1, TC, H, W), lambda b, ci: (b, ci, 0, 0)),
                pl.BlockSpec(memory_space=pltpu.MemorySpace.SMEM),
            ],
            out_specs=pl.BlockSpec((1, H, W), lambda b, ci: (b, 0, 0)),
            scratch_shapes=[
                pltpu.VMEM((2, H, W), jnp.float32),
                pltpu.VMEM((2, H + 2 * P, W + 2 * P), jnp.float32),
                pltpu.VMEM((H + 2 * P, W), jnp.float32),
            ],
        ),
        compiler_params=pltpu.CompilerParams(
            dimension_semantics=("parallel", "arbitrary")),
        cost_estimate=pl.CostEstimate(
            flops=flops, transcendentals=B * H * W,
            bytes_accessed=bytes_accessed),
    )(x, w_flat)


# ---------------------------------------------------------------------------
# Pass 2: lane-dense gating  out = x * attn  on the (B, C, H*W) layout
# ---------------------------------------------------------------------------
def _gate_kernel(x_ref, a_ref, o_ref):
    # x_ref: (1, TC, TS)  a_ref: (1, 1, TS)  o_ref: (1, TC, TS)
    o_ref[...] = x_ref[...] * a_ref[...].astype(o_ref.dtype)


def _gate(x_flat, attn_flat):
    B, C, HWp = x_flat.shape
    TS = _largest_divisor(HWp, 2048, quantum=LANE)
    tc_cap = max(1, (2 * 1024 * 1024) // (TS * x_flat.dtype.itemsize))
    TC = _pick_channel_tile(C, tc_cap)
    grid = (B, C // TC, HWp // TS)

    bytes_accessed = 2 * B * C * HWp * x_flat.dtype.itemsize + B * HWp * 4
    return pl.pallas_call(
        _gate_kernel,
        out_shape=jax.ShapeDtypeStruct((B, C, HWp), x_flat.dtype),
        grid_spec=pltpu.PrefetchScalarGridSpec(
            num_scalar_prefetch=0,
            grid=grid,
            in_specs=[
                pl.BlockSpec((1, TC, TS), lambda b, ci, si: (b, ci, si)),
                pl.BlockSpec((1, 1, TS), lambda b, ci, si: (b, 0, si)),
            ],
            out_specs=pl.BlockSpec((1, TC, TS), lambda b, ci, si: (b, ci, si)),
        ),
        compiler_params=pltpu.CompilerParams(
            dimension_semantics=("parallel", "parallel", "parallel")),
        cost_estimate=pl.CostEstimate(
            flops=B * C * HWp, transcendentals=0,
            bytes_accessed=bytes_accessed),
    )(x_flat, attn_flat)


# ---------------------------------------------------------------------------
# Full module forward
# ---------------------------------------------------------------------------
@jax.jit
def spatial_attention(x, w):
    """x: (B, C, H, W); w: (1, 2, K, K) OIHW conv weight (bias-free)."""
    B, C, H, W = x.shape
    w_flat = w.reshape(-1).astype(jnp.float32)          # (2*K*K,) for SMEM

    attn = _attention_map(x, w_flat)                     # (B, H, W) float32

    HW = H * W
    HWp = _round_up(HW, LANE)
    x_flat = x.reshape(B, C, HW)
    attn_flat = attn.reshape(B, 1, HW)
    if HWp != HW:
        x_flat = jnp.pad(x_flat, ((0, 0), (0, 0), (0, HWp - HW)))
        attn_flat = jnp.pad(attn_flat, ((0, 0), (0, 0), (0, HWp - HW)))

    out = _gate(x_flat, attn_flat)                       # (B, C, HWp)
    return out[..., :HW].reshape(B, C, H, W)


def _reference(x, w):
    # pure-JAX reference mirroring the PyTorch forward
    avg = jnp.mean(x, axis=1, keepdims=True)
    mx = jnp.max(x, axis=1, keepdims=True)
    cat = jnp.concatenate([avg, mx], axis=1)
    conv = jax.lax.conv_general_dilated(
        cat, w, window_strides=(1, 1), padding=[(P, P), (P, P)],
        dimension_numbers=('NCHW', 'OIHW', 'NCHW'))
    return x * jax.nn.sigmoid(conv)


if __name__ == "__main__":
    key = jax.random.PRNGKey(0)
    kx, kw = jax.random.split(key)

    B, C, H, W = 2, 4, 16, 16
    x = jax.random.normal(kx, (B, C, H, W), dtype=jnp.float32)
    # Conv2d(2, 1, 7, bias=False) weight in OIHW layout (1, 2, 7, 7)
    w = jax.random.normal(kw, (1, 2, K, K), dtype=jnp.float32) * 0.05

    out = spatial_attention(x, w)
    out = jax.block_until_ready(out)

    ref = jax.block_until_ready(_reference(x, w))
    np.testing.assert_allclose(np.asarray(out), np.asarray(ref),
                               rtol=1e-5, atol=1e-5)

    print("KERNEL_OK")
</pallas_src>

<mosaic_0001>
module attributes {stable_mosaic.version = 11 : i64} {
  func.func @_attention_map_kernel(%arg0: i32, %arg1: i32, %arg2: memref<1x4x16x16xf32, #tpu.memory_space<vmem>>, %arg3: memref<98xf32, #tpu.memory_space<smem>>, %arg4: memref<1x16x16xf32, #tpu.memory_space<vmem>>, %arg5: memref<2x16x16xf32, #tpu.memory_space<vmem>>, %arg6: memref<2x22x22xf32, #tpu.memory_space<vmem>>, %arg7: memref<22x16xf32, #tpu.memory_space<vmem>>) attributes {dimension_semantics = [#tpu.dimension_semantics<parallel>, #tpu.dimension_semantics<arbitrary>], iteration_bounds = array<i64: 2, 1>, scalar_prefetch = 0 : i64, scratch_operands = 3 : i64, tpu.core_type = #tpu.core_type<tc>, window_params = [{transform_indices = @transform_0, window_bounds = array<i64: 1, 4, 16, 16>}, {transform_indices = @transform_1, window_bounds = array<i64: 98>}, {transform_indices = @transform_2, window_bounds = array<i64: 1, 16, 16>}]} {
    %c0_i32 = arith.constant 0 : i32
    %0 = arith.cmpi eq, %arg0, %c0_i32 : i32
    %c0_i32_0 = arith.constant 0 : i32
    %1 = arith.cmpi eq, %arg1, %c0_i32_0 : i32
    %2 = arith.andi %0, %1 : i1
    %3 = arith.extui %2 : i1 to i32
    %c0_i32_1 = arith.constant 0 : i32
    %4 = arith.cmpi ne, %3, %c0_i32_1 : i32
    scf.if %4 {
      %cst_21 = arith.constant 0.000000e+00 : f32
      %27 = vector.broadcast %cst_21 : f32 to vector<2x22x22xf32>
      %c0_22 = arith.constant 0 : index
      %c0_23 = arith.constant 0 : index
      %c0_24 = arith.constant 0 : index
      %28 = vector.load %arg6[%c0_22, %c0_23, %c0_24] : memref<2x22x22xf32, #tpu.memory_space<vmem>>, vector<2x22x22xf32>
      tpu.vector_store %arg6[%c0_22, %c0_23, %c0_24], %27 {strides = array<i32>} : memref<2x22x22xf32, #tpu.memory_space<vmem>>, vector<2x22x22xf32>,
    } else {
    }
    %c0_i32_2 = arith.constant 0 : i32
    %5 = arith.cmpi eq, %arg1, %c0_i32_2 : i32
    %6 = arith.extui %5 : i1 to i32
    %c0_i32_3 = arith.constant 0 : i32
    %7 = arith.cmpi ne, %6, %c0_i32_3 : i32
    scf.if %7 {
      %cst_21 = arith.constant 0.000000e+00 : f32
      %27 = vector.broadcast %cst_21 : f32 to vector<16x16xf32>
      %c0_22 = arith.constant 0 : index
      %c0_23 = arith.constant 0 : index
      %c0_24 = arith.constant 0 : index
      %28 = vector.load %arg5[%c0_22, %c0_23, %c0_24] : memref<2x16x16xf32, #tpu.memory_space<vmem>>, vector<1x16x16xf32>
      %29 = vector.shape_cast %28 : vector<1x16x16xf32> to vector<16x16xf32>
      %30 = vector.shape_cast %27 : vector<16x16xf32> to vector<1x16x16xf32>
      tpu.vector_store %arg5[%c0_22, %c0_23, %c0_24], %30 {strides = array<i32>} : memref<2x16x16xf32, #tpu.memory_space<vmem>>, vector<1x16x16xf32>,
      %cst_25 = arith.constant 0xFF800000 : f32
      %31 = vector.broadcast %cst_25 : f32 to vector<16x16xf32>
      %c1_26 = arith.constant 1 : index
      %c0_27 = arith.constant 0 : index
      %c0_28 = arith.constant 0 : index
      %32 = vector.load %arg5[%c1_26, %c0_27, %c0_28] : memref<2x16x16xf32, #tpu.memory_space<vmem>>, vector<1x16x16xf32>
      %33 = vector.shape_cast %32 : vector<1x16x16xf32> to vector<16x16xf32>
      %34 = vector.shape_cast %31 : vector<16x16xf32> to vector<1x16x16xf32>
      tpu.vector_store %arg5[%c1_26, %c0_27, %c0_28], %34 {strides = array<i32>} : memref<2x16x16xf32, #tpu.memory_space<vmem>>, vector<1x16x16xf32>,
    } else {
    }
    %c0 = arith.constant 0 : index
    %c0_4 = arith.constant 0 : index
    %c0_5 = arith.constant 0 : index
    %c0_6 = arith.constant 0 : index
    %8 = vector.load %arg2[%c0, %c0_4, %c0_5, %c0_6] : memref<1x4x16x16xf32, #tpu.memory_space<vmem>>, vector<1x4x16x16xf32>
    %9 = vector.shape_cast %8 : vector<1x4x16x16xf32> to vector<4x16x16xf32>
    %c0_7 = arith.constant 0 : index
    %c0_8 = arith.constant 0 : index
    %c0_9 = arith.constant 0 : index
    %10 = vector.load %arg5[%c0_7, %c0_8, %c0_9] : memref<2x16x16xf32, #tpu.memory_space<vmem>>, vector<1x16x16xf32>
    %11 = vector.shape_cast %10 : vector<1x16x16xf32> to vector<16x16xf32>
    %cst = arith.constant dense<0.000000e+00> : vector<16x16xf32>
    %12 = vector.multi_reduction <add>, %9, %cst [0] : vector<4x16x16xf32> to vector<16x16xf32>
    %13 = arith.addf %11, %12 : vector<16x16xf32>
    %c0_10 = arith.constant 0 : index
    %c0_11 = arith.constant 0 : index
    %c0_12 = arith.constant 0 : index
    %14 = vector.load %arg5[%c0_10, %c0_11, %c0_12] : memref<2x16x16xf32, #tpu.memory_space<vmem>>, vector<1x16x16xf32>
    %15 = vector.shape_cast %14 : vector<1x16x16xf32> to vector<16x16xf32>
    %16 = vector.shape_cast %13 : vector<16x16xf32> to vector<1x16x16xf32>
    tpu.vector_store %arg5[%c0_10, %c0_11, %c0_12], %16 {strides = array<i32>} : memref<2x16x16xf32, #tpu.memory_space<vmem>>, vector<1x16x16xf32>,
    %c1 = arith.constant 1 : index
    %c0_13 = arith.constant 0 : index
    %c0_14 = arith.constant 0 : index
    %17 = vector.load %arg5[%c1, %c0_13, %c0_14] : memref<2x16x16xf32, #tpu.memory_space<vmem>>, vector<1x16x16xf32>
    %18 = vector.shape_cast %17 : vector<1x16x16xf32> to vector<16x16xf32>
    %cst_15 = arith.constant dense<0xFF800000> : vector<16x16xf32>
    %19 = vector.multi_reduction <maximumf>, %9, %cst_15 [0] : vector<4x16x16xf32> to vector<16x16xf32>
    %20 = arith.maximumf %18, %19 : vector<16x16xf32>
    %c1_16 = arith.constant 1 : index
    %c0_17 = arith.constant 0 : index
    %c0_18 = arith.constant 0 : index
    %21 = vector.load %arg5[%c1_16, %c0_17, %c0_18] : memref<2x16x16xf32, #tpu.memory_space<vmem>>, vector<1x16x16xf32>
    %22 = vector.shape_cast %21 : vector<1x16x16xf32> to vector<16x16xf32>
    %23 = vector.shape_cast %20 : vector<16x16xf32> to vector<1x16x16xf32>
    tpu.vector_store %arg5[%c1_16, %c0_17, %c0_18], %23 {strides = array<i32>} : memref<2x16x16xf32, #tpu.memory_space<vmem>>, vector<1x16x16xf32>,
    %c0_i32_19 = arith.constant 0 : i32
    %24 = arith.cmpi eq, %arg1, %c0_i32_19 : i32
    %25 = arith.extui %24 : i1 to i32
    %c0_i32_20 = arith.constant 0 : i32
    %26 = arith.cmpi ne, %25, %c0_i32_20 : i32
    scf.if %26 {
      %c0_21 = arith.constant 0 : index
      %c0_22 = arith.constant 0 : index
      %c0_23 = arith.constant 0 : index
      %27 = vector.load %arg5[%c0_21, %c0_22, %c0_23] : memref<2x16x16xf32, #tpu.memory_space<vmem>>, vector<1x16x16xf32>
      %28 = vector.shape_cast %27 : vector<1x16x16xf32> to vector<16x16xf32>
      %cst_24 = arith.constant 2.500000e-01 : f32
      %29 = vector.broadcast %cst_24 : f32 to vector<16x16xf32>
      %30 = arith.mulf %28, %29 : vector<16x16xf32>
      %c0_25 = arith.constant 0 : index
      %c3 = arith.constant 3 : index
      %c3_26 = arith.constant 3 : index
      %31 = vector.load %arg6[%c0_25, %c3, %c3_26] : memref<2x22x22xf32, #tpu.memory_space<vmem>>, vector<1x16x16xf32>
      %32 = vector.shape_cast %31 : vector<1x16x16xf32> to vector<16x16xf32>
      %33 = vector.shape_cast %30 : vector<16x16xf32> to vector<1x16x16xf32>
      tpu.vector_store %arg6[%c0_25, %c3, %c3_26], %33 {strides = array<i32>} : memref<2x22x22xf32, #tpu.memory_space<vmem>>, vector<1x16x16xf32>,
      %c1_27 = arith.constant 1 : index
      %c0_28 = arith.constant 0 : index
      %c0_29 = arith.constant 0 : index
      %34 = vector.load %arg5[%c1_27, %c0_28, %c0_29] : memref<2x16x16xf32, #tpu.memory_space<vmem>>, vector<1x16x16xf32>
      %35 = vector.shape_cast %34 : vector<1x16x16xf32> to vector<16x16xf32>
      %c1_30 = arith.constant 1 : index
      %c3_31 = arith.constant 3 : index
      %c3_32 = arith.constant 3 : index
      %36 = vector.load %arg6[%c1_30, %c3_31, %c3_32] : memref<2x22x22xf32, #tpu.memory_space<vmem>>, vector<1x16x16xf32>
      %37 = vector.shape_cast %36 : vector<1x16x16xf32> to vector<16x16xf32>
      %38 = vector.shape_cast %35 : vector<16x16xf32> to vector<1x16x16xf32>
      tpu.vector_store %arg6[%c1_30, %c3_31, %c3_32], %38 {strides = array<i32>} : memref<2x22x22xf32, #tpu.memory_space<vmem>>, vector<1x16x16xf32>,
      %cst_33 = arith.constant 0.000000e+00 : f32
      %39 = vector.broadcast %cst_33 : f32 to vector<16x16xf32>
      %c0_34 = arith.constant 0 : index
      %c0_35 = arith.constant 0 : index
      %c0_36 = arith.constant 0 : index
      %40 = vector.load %arg6[%c0_34, %c0_35, %c0_36] : memref<2x22x22xf32, #tpu.memory_space<vmem>>, vector<1x22x22xf32>
      %41 = vector.shape_cast %40 : vector<1x22x22xf32> to vector<22x22xf32>
      %42 = vector.extract_strided_slice %41 {offsets = [0, 0], sizes = [22, 16], strides = [1, 1]} : vector<22x22xf32> to vector<22x16xf32>
      %c0_37 = arith.constant 0 : index
      %c0_38 = arith.constant 0 : index
      %43 = vector.load %arg7[%c0_37, %c0_38] : memref<22x16xf32, #tpu.memory_space<vmem>>, vector<22x16xf32>
      tpu.vector_store %arg7[%c0_37, %c0_38], %42 {strides = array<i32>} : memref<22x16xf32, #tpu.memory_space<vmem>>, vector<22x16xf32>,
      %c0_39 = arith.constant 0 : index
      %44 = memref.load %arg3[%c0_39] : memref<98xf32, #tpu.memory_space<smem>>
      %c0_40 = arith.constant 0 : index
      %c0_41 = arith.constant 0 : index
      %45 = vector.load %arg7[%c0_40, %c0_41] : memref<22x16xf32, #tpu.memory_space<vmem>>, vector<16x16xf32>
      %46 = vector.broadcast %44 : f32 to vector<16x16xf32>
      %47 = arith.mulf %46, %45 : vector<16x16xf32>
      %48 = arith.addf %39, %47 : vector<16x16xf32>
      %c7 = arith.constant 7 : index
      %49 = memref.load %arg3[%c7] : memref<98xf32, #tpu.memory_space<smem>>
      %c1_42 = arith.constant 1 : index
      %c0_43 = arith.constant 0 : index
      %50 = vector.load %arg7[%c1_42, %c0_43] : memref<22x16xf32, #tpu.memory_space<vmem>>, vector<16x16xf32>
      %51 = vector.broadcast %49 : f32 to vector<16x16xf32>
      %52 = arith.mulf %51, %50 : vector<16x16xf32>
      %53 = arith.addf %48, %52 : vector<16x16xf32>
      %c14 = arith.constant 14 : index
      %54 = memref.load %arg3[%c14] : memref<98xf32, #tpu.memory_space<smem>>
      %c2 = arith.constant 2 : index
      %c0_44 = arith.constant 0 : index
      %55 = vector.load %arg7[%c2, %c0_44] : memref<22x16xf32, #tpu.memory_space<vmem>>, vector<16x16xf32>
      %56 = vector.broadcast %54 : f32 to vector<16x16xf32>
      %57 = arith.mulf %56, %55 : vector<16x16xf32>
      %58 = arith.addf %53, %57 : vector<16x16xf32>
      %c21 = arith.constant 21 : index
      %59 = memref.load %arg3[%c21] : memref<98xf32, #tpu.memory_space<smem>>
      %c3_45 = arith.constant 3 : index
      %c0_46 = arith.constant 0 : index
      %60 = vector.load %arg7[%c3_45, %c0_46] : memref<22x16xf32, #tpu.memory_space<vmem>>, vector<16x16xf32>
      %61 = vector.broadcast %59 : f32 to vector<16x16xf32>
      %62 = arith.mulf %61, %60 : vector<16x16xf32>
      %63 = arith.addf %58, %62 : vector<16x16xf32>
      %c28 = arith.constant 28 : index
      %64 = memref.load %arg3[%c28] : memref<98xf32, #tpu.memory_space<smem>>
      %c4 = arith.constant 4 : index
      %c0_47 = arith.constant 0 : index
      %65 = vector.load %arg7[%c4, %c0_47] : memref<22x16xf32, #tpu.memory_space<vmem>>, vector<16x16xf32>
      %66 = vector.broadcast %64 : f32 to vector<16x16xf32>
      %67 = arith.mulf %66, %65 : vector<16x16xf32>
      %68 = arith.addf %63, %67 : vector<16x16xf32>
      %c35 = arith.constant 35 : index
      %69 = memref.load %arg3[%c35] : memref<98xf32, #tpu.memory_space<smem>>
      %c5 = arith.constant 5 : index
      %c0_48 = arith.constant 0 : index
      %70 = vector.load %arg7[%c5, %c0_48] : memref<22x16xf32, #tpu.memory_space<vmem>>, vector<16x16xf32>
      %71 = vector.broadcast %69 : f32 to vector<16x16xf32>
      %72 = arith.mulf %71, %70 : vector<16x16xf32>
      %73 = arith.addf %68, %72 : vector<16x16xf32>
      %c42 = arith.constant 42 : index
      %74 = memref.load %arg3[%c42] : memref<98xf32, #tpu.memory_space<smem>>
      %c6 = arith.constant 6 : index
      %c0_49 = arith.constant 0 : index
      %75 = vector.load %arg7[%c6, %c0_49] : memref<22x16xf32, #tpu.memory_space<vmem>>, vector<16x16xf32>
      %76 = vector.broadcast %74 : f32 to vector<16x16xf32>
      %77 = arith.mulf %76, %75 : vector<16x16xf32>
      %78 = arith.addf %73, %77 : vector<16x16xf32>
      %79 = vector.extract_strided_slice %41 {offsets = [0, 1], sizes = [22, 16], strides = [1, 1]} : vector<22x22xf32> to vector<22x16xf32>
      %c0_50 = arith.constant 0 : index
      %c0_51 = arith.constant 0 : index
      %80 = vector.load %arg7[%c0_50, %c0_51] : memref<22x16xf32, #tpu.memory_space<vmem>>, vector<22x16xf32>
      tpu.vector_store %arg7[%c0_50, %c0_51], %79 {strides = array<i32>} : memref<22x16xf32, #tpu.memory_space<vmem>>, vector<22x16xf32>,
      %c1_52 = arith.constant 1 : index
      %81 = memref.load %arg3[%c1_52] : memref<98xf32, #tpu.memory_space<smem>>
      %c0_53 = arith.constant 0 : index
      %c0_54 = arith.constant 0 : index
      %82 = vector.load %arg7[%c0_53, %c0_54] : memref<22x16xf32, #tpu.memory_space<vmem>>, vector<16x16xf32>
      %83 = vector.broadcast %81 : f32 to vector<16x16xf32>
      %84 = arith.mulf %83, %82 : vector<16x16xf32>
      %85 = arith.addf %78, %84 : vector<16x16xf32>
      %c8 = arith.constant 8 : index
      %86 = memref.load %arg3[%c8] : memref<98xf32, #tpu.memory_space<smem>>
      %c1_55 = arith.constant 1 : index
      %c0_56 = arith.constant 0 : index
      %87 = vector.load %arg7[%c1_55, %c0_56] : memref<22x16xf32, #tpu.memory_space<vmem>>, vector<16x16xf32>
      %88 = vector.broadcast %86 : f32 to vector<16x16xf32>
      %89 = arith.mulf %88, %87 : vector<16x16xf32>
      %90 = arith.addf %85, %89 : vector<16x16xf32>
      %c15 = arith.constant 15 : index
      %91 = memref.load %arg3[%c15] : memref<98xf32, #tpu.memory_space<smem>>
      %c2_57 = arith.constant 2 : index
      %c0_58 = arith.constant 0 : index
      %92 = vector.load %arg7[%c2_57, %c0_58] : memref<22x16xf32, #tpu.memory_space<vmem>>, vector<16x16xf32>
      %93 = vector.broadcast %91 : f32 to vector<16x16xf32>
      %94 = arith.mulf %93, %92 : vector<16x16xf32>
      %95 = arith.addf %90, %94 : vector<16x16xf32>
      %c22 = arith.constant 22 : index
      %96 = memref.load %arg3[%c22] : memref<98xf32, #tpu.memory_space<smem>>
      %c3_59 = arith.constant 3 : index
      %c0_60 = arith.constant 0 : index
      %97 = vector.load %arg7[%c3_59, %c0_60] : memref<22x16xf32, #tpu.memory_space<vmem>>, vector<16x16xf32>
      %98 = vector.broadcast %96 : f32 to vector<16x16xf32>
      %99 = arith.mulf %98, %97 : vector<16x16xf32>
      %100 = arith.addf %95, %99 : vector<16x16xf32>
      %c29 = arith.constant 29 : index
      %101 = memref.load %arg3[%c29] : memref<98xf32, #tpu.memory_space<smem>>
      %c4_61 = arith.constant 4 : index
      %c0_62 = arith.constant 0 : index
      %102 = vector.load %arg7[%c4_61, %c0_62] : memref<22x16xf32, #tpu.memory_space<vmem>>, vector<16x16xf32>
      %103 = vector.broadcast %101 : f32 to vector<16x16xf32>
      %104 = arith.mulf %103, %102 : vector<16x16xf32>
      %105 = arith.addf %100, %104 : vector<16x16xf32>
      %c36 = arith.constant 36 : index
      %106 = memref.load %arg3[%c36] : memref<98xf32, #tpu.memory_space<smem>>
      %c5_63 = arith.constant 5 : index
      %c0_64 = arith.constant 0 : index
      %107 = vector.load %arg7[%c5_63, %c0_64] : memref<22x16xf32, #tpu.memory_space<vmem>>, vector<16x16xf32>
      %108 = vector.broadcast %106 : f32 to vector<16x16xf32>
      %109 = arith.mulf %108, %107 : vector<16x16xf32>
      %110 = arith.addf %105, %109 : vector<16x16xf32>
      %c43 = arith.constant 43 : index
      %111 = memref.load %arg3[%c43] : memref<98xf32, #tpu.memory_space<smem>>
      %c6_65 = arith.constant 6 : index
      %c0_66 = arith.constant 0 : index
      %112 = vector.load %arg7[%c6_65, %c0_66] : memref<22x16xf32, #tpu.memory_space<vmem>>, vector<16x16xf32>
      %113 = vector.broadcast %111 : f32 to vector<16x16xf32>
      %114 = arith.mulf %113, %112 : vector<16x16xf32>
      %115 = arith.addf %110, %114 : vector<16x16xf32>
      %116 = vector.extract_strided_slice %41 {offsets = [0, 2], sizes = [22, 16], strides = [1, 1]} : vector<22x22xf32> to vector<22x16xf32>
      %c0_67 = arith.constant 0 : index
      %c0_68 = arith.constant 0 : index
      %117 = vector.load %arg7[%c0_67, %c0_68] : memref<22x16xf32, #tpu.memory_space<vmem>>, vector<22x16xf32>
      tpu.vector_store %arg7[%c0_67, %c0_68], %116 {strides = array<i32>} : memref<22x16xf32, #tpu.memory_space<vmem>>, vector<22x16xf32>,
      %c2_69 = arith.constant 2 : index
      %118 = memref.load %arg3[%c2_69] : memref<98xf32, #tpu.memory_space<smem>>
      %c0_70 = arith.constant 0 : index
      %c0_71 = arith.constant 0 : index
      %119 = vector.load %arg7[%c0_70, %c0_71] : memref<22x16xf32, #tpu.memory_space<vmem>>, vector<16x16xf32>
      %120 = vector.broadcast %118 : f32 to vector<16x16xf32>
      %121 = arith.mulf %120, %119 : vector<16x16xf32>
      %122 = arith.addf %115, %121 : vector<16x16xf32>
      %c9 = arith.constant 9 : index
      %123 = memref.load %arg3[%c9] : memref<98xf32, #tpu.memory_space<smem>>
      %c1_72 = arith.constant 1 : index
      %c0_73 = arith.constant 0 : index
      %124 = vector.load %arg7[%c1_72, %c0_73] : memref<22x16xf32, #tpu.memory_space<vmem>>, vector<16x16xf32>
      %125 = vector.broadcast %123 : f32 to vector<16x16xf32>
      %126 = arith.mulf %125, %124 : vector<16x16xf32>
      %127 = arith.addf %122, %126 : vector<16x16xf32>
      %c16 = arith.constant 16 : index
      %128 = memref.load %arg3[%c16] : memref<98xf32, #tpu.memory_space<smem>>
      %c2_74 = arith.constant 2 : index
      %c0_75 = arith.constant 0 : index
      %129 = vector.load %arg7[%c2_74, %c0_75] : memref<22x16xf32, #tpu.memory_space<vmem>>, vector<16x16xf32>
      %130 = vector.broadcast %128 : f32 to vector<16x16xf32>
      %131 = arith.mulf %130, %129 : vector<16x16xf32>
      %132 = arith.addf %127, %131 : vector<16x16xf32>
      %c23 = arith.constant 23 : index
      %133 = memref.load %arg3[%c23] : memref<98xf32, #tpu.memory_space<smem>>
      %c3_76 = arith.constant 3 : index
      %c0_77 = arith.constant 0 : index
      %134 = vector.load %arg7[%c3_76, %c0_77] : memref<22x16xf32, #tpu.memory_space<vmem>>, vector<16x16xf32>
      %135 = vector.broadcast %133 : f32 to vector<16x16xf32>
      %136 = arith.mulf %135, %134 : vector<16x16xf32>
      %137 = arith.addf %132, %136 : vector<16x16xf32>
      %c30 = arith.constant 30 : index
      %138 = memref.load %arg3[%c30] : memref<98xf32, #tpu.memory_space<smem>>
      %c4_78 = arith.constant 4 : index
      %c0_79 = arith.constant 0 : index
      %139 = vector.load %arg7[%c4_78, %c0_79] : memref<22x16xf32, #tpu.memory_space<vmem>>, vector<16x16xf32>
      %140 = vector.broadcast %138 : f32 to vector<16x16xf32>
      %141 = arith.mulf %140, %139 : vector<16x16xf32>
      %142 = arith.addf %137, %141 : vector<16x16xf32>
      %c37 = arith.constant 37 : index
      %143 = memref.load %arg3[%c37] : memref<98xf32, #tpu.memory_space<smem>>
      %c5_80 = arith.constant 5 : index
      %c0_81 = arith.constant 0 : index
      %144 = vector.load %arg7[%c5_80, %c0_81] : memref<22x16xf32, #tpu.memory_space<vmem>>, vector<16x16xf32>
      %145 = vector.broadcast %143 : f32 to vector<16x16xf32>
      %146 = arith.mulf %145, %144 : vector<16x16xf32>
      %147 = arith.addf %142, %146 : vector<16x16xf32>
      %c44 = arith.constant 44 : index
      %148 = memref.load %arg3[%c44] : memref<98xf32, #tpu.memory_space<smem>>
      %c6_82 = arith.constant 6 : index
      %c0_83 = arith.constant 0 : index
      %149 = vector.load %arg7[%c6_82, %c0_83] : memref<22x16xf32, #tpu.memory_space<vmem>>, vector<16x16xf32>
      %150 = vector.broadcast %148 : f32 to vector<16x16xf32>
      %151 = arith.mulf %150, %149 : vector<16x16xf32>
      %152 = arith.addf %147, %151 : vector<16x16xf32>
      %153 = vector.extract_strided_slice %41 {offsets = [0, 3], sizes = [22, 16], strides = [1, 1]} : vector<22x22xf32> to vector<22x16xf32>
      %c0_84 = arith.constant 0 : index
      %c0_85 = arith.constant 0 : index
      %154 = vector.load %arg7[%c0_84, %c0_85] : memref<22x16xf32, #tpu.memory_space<vmem>>, vector<22x16xf32>
      tpu.vector_store %arg7[%c0_84, %c0_85], %153 {strides = array<i32>} : memref<22x16xf32, #tpu.memory_space<vmem>>, vector<22x16xf32>,
      %c3_86 = arith.constant 3 : index
      %155 = memref.load %arg3[%c3_86] : memref<98xf32, #tpu.memory_space<smem>>
      %c0_87 = arith.constant 0 : index
      %c0_88 = arith.constant 0 : index
      %156 = vector.load %arg7[%c0_87, %c0_88] : memref<22x16xf32, #tpu.memory_space<vmem>>, vector<16x16xf32>
      %157 = vector.broadcast %155 : f32 to vector<16x16xf32>
      %158 = arith.mulf %157, %156 : vector<16x16xf32>
      %159 = arith.addf %152, %158 : vector<16x16xf32>
      %c10 = arith.constant 10 : index
      %160 = memref.load %arg3[%c10] : memref<98xf32, #tpu.memory_space<smem>>
      %c1_89 = arith.constant 1 : index
      %c0_90 = arith.constant 0 : index
      %161 = vector.load %arg7[%c1_89, %c0_90] : memref<22x16xf32, #tpu.memory_space<vmem>>, vector<16x16xf32>
      %162 = vector.broadcast %160 : f32 to vector<16x16xf32>
      %163 = arith.mulf %162, %161 : vector<16x16xf32>
      %164 = arith.addf %159, %163 : vector<16x16xf32>
      %c17 = arith.constant 17 : index
      %165 = memref.load %arg3[%c17] : memref<98xf32, #tpu.memory_space<smem>>
      %c2_91 = arith.constant 2 : index
      %c0_92 = arith.constant 0 : index
      %166 = vector.load %arg7[%c2_91, %c0_92] : memref<22x16xf32, #tpu.memory_space<vmem>>, vector<16x16xf32>
      %167 = vector.broadcast %165 : f32 to vector<16x16xf32>
      %168 = arith.mulf %167, %166 : vector<16x16xf32>
      %169 = arith.addf %164, %168 : vector<16x16xf32>
      %c24 = arith.constant 24 : index
      %170 = memref.load %arg3[%c24] : memref<98xf32, #tpu.memory_space<smem>>
      %c3_93 = arith.constant 3 : index
      %c0_94 = arith.constant 0 : index
      %171 = vector.load %arg7[%c3_93, %c0_94] : memref<22x16xf32, #tpu.memory_space<vmem>>, vector<16x16xf32>
      %172 = vector.broadcast %170 : f32 to vector<16x16xf32>
      %173 = arith.mulf %172, %171 : vector<16x16xf32>
      %174 = arith.addf %169, %173 : vector<16x16xf32>
      %c31 = arith.constant 31 : index
      %175 = memref.load %arg3[%c31] : memref<98xf32, #tpu.memory_space<smem>>
      %c4_95 = arith.constant 4 : index
      %c0_96 = arith.constant 0 : index
      %176 = vector.load %arg7[%c4_95, %c0_96] : memref<22x16xf32, #tpu.memory_space<vmem>>, vector<16x16xf32>
      %177 = vector.broadcast %175 : f32 to vector<16x16xf32>
      %178 = arith.mulf %177, %176 : vector<16x16xf32>
      %179 = arith.addf %174, %178 : vector<16x16xf32>
      %c38 = arith.constant 38 : index
      %180 = memref.load %arg3[%c38] : memref<98xf32, #tpu.memory_space<smem>>
      %c5_97 = arith.constant 5 : index
      %c0_98 = arith.constant 0 : index
      %181 = vector.load %arg7[%c5_97, %c0_98] : memref<22x16xf32, #tpu.memory_space<vmem>>, vector<16x16xf32>
      %182 = vector.broadcast %180 : f32 to vector<16x16xf32>
      %183 = arith.mulf %182, %181 : vector<16x16xf32>
      %184 = arith.addf %179, %183 : vector<16x16xf32>
      %c45 = arith.constant 45 : index
      %185 = memref.load %arg3[%c45] : memref<98xf32, #tpu.memory_space<smem>>
      %c6_99 = arith.constant 6 : index
      %c0_100 = arith.constant 0 : index
      %186 = vector.load %arg7[%c6_99, %c0_100] : memref<22x16xf32, #tpu.memory_space<vmem>>, vector<16x16xf32>
      %187 = vector.broadcast %185 : f32 to vector<16x16xf32>
      %188 = arith.mulf %187, %186 : vector<16x16xf32>
      %189 = arith.addf %184, %188 : vector<16x16xf32>
      %190 = vector.extract_strided_slice %41 {offsets = [0, 4], sizes = [22, 16], strides = [1, 1]} : vector<22x22xf32> to vector<22x16xf32>
      %c0_101 = arith.constant 0 : index
      %c0_102 = arith.constant 0 : index
      %191 = vector.load %arg7[%c0_101, %c0_102] : memref<22x16xf32, #tpu.memory_space<vmem>>, vector<22x16xf32>
      tpu.vector_store %arg7[%c0_101, %c0_102], %190 {strides = array<i32>} : memref<22x16xf32, #tpu.memory_space<vmem>>, vector<22x16xf32>,
      %c4_103 = arith.constant 4 : index
      %192 = memref.load %arg3[%c4_103] : memref<98xf32, #tpu.memory_space<smem>>
      %c0_104 = arith.constant 0 : index
      %c0_105 = arith.constant 0 : index
      %193 = vector.load %arg7[%c0_104, %c0_105] : memref<22x16xf32, #tpu.memory_space<vmem>>, vector<16x16xf32>
      %194 = vector.broadcast %192 : f32 to vector<16x16xf32>
      %195 = arith.mulf %194, %193 : vector<16x16xf32>
      %196 = arith.addf %189, %195 : vector<16x16xf32>
      %c11 = arith.constant 11 : index
      %197 = memref.load %arg3[%c11] : memref<98xf32, #tpu.memory_space<smem>>
      %c1_106 = arith.constant 1 : index
      %c0_107 = arith.constant 0 : index
      %198 = vector.load %arg7[%c1_106, %c0_107] : memref<22x16xf32, #tpu.memory_space<vmem>>, vector<16x16xf32>
      %199 = vector.broadcast %197 : f32 to vector<16x16xf32>
      %200 = arith.mulf %199, %198 : vector<16x16xf32>
      %201 = arith.addf %196, %200 : vector<16x16xf32>
      %c18 = arith.constant 18 : index
      %202 = memref.load %arg3[%c18] : memref<98xf32, #tpu.memory_space<smem>>
      %c2_108 = arith.constant 2 : index
      %c0_109 = arith.constant 0 : index
      %203 = vector.load %arg7[%c2_108, %c0_109] : memref<22x16xf32, #tpu.memory_space<vmem>>, vector<16x16xf32>
      %204 = vector.broadcast %202 : f32 to vector<16x16xf32>
      %205 = arith.mulf %204, %203 : vector<16x16xf32>
      %206 = arith.addf %201, %205 : vector<16x16xf32>
      %c25 = arith.constant 25 : index
      %207 = memref.load %arg3[%c25] : memref<98xf32, #tpu.memory_space<smem>>
      %c3_110 = arith.constant 3 : index
      %c0_111 = arith.constant 0 : index
      %208 = vector.load %arg7[%c3_110, %c0_111] : memref<22x16xf32, #tpu.memory_space<vmem>>, vector<16x16xf32>
      %209 = vector.broadcast %207 : f32 to vector<16x16xf32>
      %210 = arith.mulf %209, %208 : vector<16x16xf32>
      %211 = arith.addf %206, %210 : vector<16x16xf32>
      %c32 = arith.constant 32 : index
      %212 = memref.load %arg3[%c32] : memref<98xf32, #tpu.memory_space<smem>>
      %c4_112 = arith.constant 4 : index
      %c0_113 = arith.constant 0 : index
      %213 = vector.load %arg7[%c4_112, %c0_113] : memref<22x16xf32, #tpu.memory_space<vmem>>, vector<16x16xf32>
      %214 = vector.broadcast %212 : f32 to vector<16x16xf32>
      %215 = arith.mulf %214, %213 : vector<16x16xf32>
      %216 = arith.addf %211, %215 : vector<16x16xf32>
      %c39 = arith.constant 39 : index
      %217 = memref.load %arg3[%c39] : memref<98xf32, #tpu.memory_space<smem>>
      %c5_114 = arith.constant 5 : index
      %c0_115 = arith.constant 0 : index
      %218 = vector.load %arg7[%c5_114, %c0_115] : memref<22x16xf32, #tpu.memory_space<vmem>>, vector<16x16xf32>
      %219 = vector.broadcast %217 : f32 to vector<16x16xf32>
      %220 = arith.mulf %219, %218 : vector<16x16xf32>
      %221 = arith.addf %216, %220 : vector<16x16xf32>
      %c46 = arith.constant 46 : index
      %222 = memref.load %arg3[%c46] : memref<98xf32, #tpu.memory_space<smem>>
      %c6_116 = arith.constant 6 : index
      %c0_117 = arith.constant 0 : index
      %223 = vector.load %arg7[%c6_116, %c0_117] : memref<22x16xf32, #tpu.memory_space<vmem>>, vector<16x16xf32>
      %224 = vector.broadcast %222 : f32 to vector<16x16xf32>
      %225 = arith.mulf %224, %223 : vector<16x16xf32>
      %226 = arith.addf %221, %225 : vector<16x16xf32>
      %227 = vector.extract_strided_slice %41 {offsets = [0, 5], sizes = [22, 16], strides = [1, 1]} : vector<22x22xf32> to vector<22x16xf32>
      %c0_118 = arith.constant 0 : index
      %c0_119 = arith.constant 0 : index
      %228 = vector.load %arg7[%c0_118, %c0_119] : memref<22x16xf32, #tpu.memory_space<vmem>>, vector<22x16xf32>
      tpu.vector_store %arg7[%c0_118, %c0_119], %227 {strides = array<i32>} : memref<22x16xf32, #tpu.memory_space<vmem>>, vector<22x16xf32>,
      %c5_120 = arith.constant 5 : index
      %229 = memref.load %arg3[%c5_120] : memref<98xf32, #tpu.memory_space<smem>>
      %c0_121 = arith.constant 0 : index
      %c0_122 = arith.constant 0 : index
      %230 = vector.load %arg7[%c0_121, %c0_122] : memref<22x16xf32, #tpu.memory_space<vmem>>, vector<16x16xf32>
      %231 = vector.broadcast %229 : f32 to vector<16x16xf32>
      %232 = arith.mulf %231, %230 : vector<16x16xf32>
      %233 = arith.addf %226, %232 : vector<16x16xf32>
      %c12 = arith.constant 12 : index
      %234 = memref.load %arg3[%c12] : memref<98xf32, #tpu.memory_space<smem>>
      %c1_123 = arith.constant 1 : index
      %c0_124 = arith.constant 0 : index
      %235 = vector.load %arg7[%c1_123, %c0_124] : memref<22x16xf32, #tpu.memory_space<vmem>>, vector<16x16xf32>
      %236 = vector.broadcast %234 : f32 to vector<16x16xf32>
      %237 = arith.mulf %236, %235 : vector<16x16xf32>
      %238 = arith.addf %233, %237 : vector<16x16xf32>
      %c19 = arith.constant 19 : index
      %239 = memref.load %arg3[%c19] : memref<98xf32, #tpu.memory_space<smem>>
      %c2_125 = arith.constant 2 : index
      %c0_126 = arith.constant 0 : index
      %240 = vector.load %arg7[%c2_125, %c0_126] : memref<22x16xf32, #tpu.memory_space<vmem>>, vector<16x16xf32>
      %241 = vector.broadcast %239 : f32 to vector<16x16xf32>
      %242 = arith.mulf %241, %240 : vector<16x16xf32>
      %243 = arith.addf %238, %242 : vector<16x16xf32>
      %c26 = arith.constant 26 : index
      %244 = memref.load %arg3[%c26] : memref<98xf32, #tpu.memory_space<smem>>
      %c3_127 = arith.constant 3 : index
      %c0_128 = arith.constant 0 : index
      %245 = vector.load %arg7[%c3_127, %c0_128] : memref<22x16xf32, #tpu.memory_space<vmem>>, vector<16x16xf32>
      %246 = vector.broadcast %244 : f32 to vector<16x16xf32>
      %247 = arith.mulf %246, %245 : vector<16x16xf32>
      %248 = arith.addf %243, %247 : vector<16x16xf32>
      %c33 = arith.constant 33 : index
      %249 = memref.load %arg3[%c33] : memref<98xf32, #tpu.memory_space<smem>>
      %c4_129 = arith.constant 4 : index
      %c0_130 = arith.constant 0 : index
      %250 = vector.load %arg7[%c4_129, %c0_130] : memref<22x16xf32, #tpu.memory_space<vmem>>, vector<16x16xf32>
      %251 = vector.broadcast %249 : f32 to vector<16x16xf32>
      %252 = arith.mulf %251, %250 : vector<16x16xf32>
      %253 = arith.addf %248, %252 : vector<16x16xf32>
      %c40 = arith.constant 40 : index
      %254 = memref.load %arg3[%c40] : memref<98xf32, #tpu.memory_space<smem>>
      %c5_131 = arith.constant 5 : index
      %c0_132 = arith.constant 0 : index
      %255 = vector.load %arg7[%c5_131, %c0_132] : memref<22x16xf32, #tpu.memory_space<vmem>>, vector<16x16xf32>
      %256 = vector.broadcast %254 : f32 to vector<16x16xf32>
      %257 = arith.mulf %256, %255 : vector<16x16xf32>
      %258 = arith.addf %253, %257 : vector<16x16xf32>
      %c47 = arith.constant 47 : index
      %259 = memref.load %arg3[%c47] : memref<98xf32, #tpu.memory_space<smem>>
      %c6_133 = arith.constant 6 : index
      %c0_134 = arith.constant 0 : index
      %260 = vector.load %arg7[%c6_133, %c0_134] : memref<22x16xf32, #tpu.memory_space<vmem>>, vector<16x16xf32>
      %261 = vector.broadcast %259 : f32 to vector<16x16xf32>
      %262 = arith.mulf %261, %260 : vector<16x16xf32>
      %263 = arith.addf %258, %262 : vector<16x16xf32>
      %264 = vector.extract_strided_slice %41 {offsets = [0, 6], sizes = [22, 16], strides = [1, 1]} : vector<22x22xf32> to vector<22x16xf32>
      %c0_135 = arith.constant 0 : index
      %c0_136 = arith.constant 0 : index
      %265 = vector.load %arg7[%c0_135, %c0_136] : memref<22x16xf32, #tpu.memory_space<vmem>>, vector<22x16xf32>
      tpu.vector_store %arg7[%c0_135, %c0_136], %264 {strides = array<i32>} : memref<22x16xf32, #tpu.memory_space<vmem>>, vector<22x16xf32>,
      %c6_137 = arith.constant 6 : index
      %266 = memref.load %arg3[%c6_137] : memref<98xf32, #tpu.memory_space<smem>>
      %c0_138 = arith.constant 0 : index
      %c0_139 = arith.constant 0 : index
      %267 = vector.load %arg7[%c0_138, %c0_139] : memref<22x16xf32, #tpu.memory_space<vmem>>, vector<16x16xf32>
      %268 = vector.broadcast %266 : f32 to vector<16x16xf32>
      %269 = arith.mulf %268, %267 : vector<16x16xf32>
      %270 = arith.addf %263, %269 : vector<16x16xf32>
      %c13 = arith.constant 13 : index
      %271 = memref.load %arg3[%c13] : memref<98xf32, #tpu.memory_space<smem>>
      %c1_140 = arith.constant 1 : index
      %c0_141 = arith.constant 0 : index
      %272 = vector.load %arg7[%c1_140, %c0_141] : memref<22x16xf32, #tpu.memory_space<vmem>>, vector<16x16xf32>
      %273 = vector.broadcast %271 : f32 to vector<16x16xf32>
      %274 = arith.mulf %273, %272 : vector<16x16xf32>
      %275 = arith.addf %270, %274 : vector<16x16xf32>
      %c20 = arith.constant 20 : index
      %276 = memref.load %arg3[%c20] : memref<98xf32, #tpu.memory_space<smem>>
      %c2_142 = arith.constant 2 : index
      %c0_143 = arith.constant 0 : index
      %277 = vector.load %arg7[%c2_142, %c0_143] : memref<22x16xf32, #tpu.memory_space<vmem>>, vector<16x16xf32>
      %278 = vector.broadcast %276 : f32 to vector<16x16xf32>
      %279 = arith.mulf %278, %277 : vector<16x16xf32>
      %280 = arith.addf %275, %279 : vector<16x16xf32>
      %c27 = arith.constant 27 : index
      %281 = memref.load %arg3[%c27] : memref<98xf32, #tpu.memory_space<smem>>
      %c3_144 = arith.constant 3 : index
      %c0_145 = arith.constant 0 : index
      %282 = vector.load %arg7[%c3_144, %c0_145] : memref<22x16xf32, #tpu.memory_space<vmem>>, vector<16x16xf32>
      %283 = vector.broadcast %281 : f32 to vector<16x16xf32>
      %284 = arith.mulf %283, %282 : vector<16x16xf32>
      %285 = arith.addf %280, %284 : vector<16x16xf32>
      %c34 = arith.constant 34 : index
      %286 = memref.load %arg3[%c34] : memref<98xf32, #tpu.memory_space<smem>>
      %c4_146 = arith.constant 4 : index
      %c0_147 = arith.constant 0 : index
      %287 = vector.load %arg7[%c4_146, %c0_147] : memref<22x16xf32, #tpu.memory_space<vmem>>, vector<16x16xf32>
      %288 = vector.broadcast %286 : f32 to vector<16x16xf32>
      %289 = arith.mulf %288, %287 : vector<16x16xf32>
      %290 = arith.addf %285, %289 : vector<16x16xf32>
      %c41 = arith.constant 41 : index
      %291 = memref.load %arg3[%c41] : memref<98xf32, #tpu.memory_space<smem>>
      %c5_148 = arith.constant 5 : index
      %c0_149 = arith.constant 0 : index
      %292 = vector.load %arg7[%c5_148, %c0_149] : memref<22x16xf32, #tpu.memory_space<vmem>>, vector<16x16xf32>
      %293 = vector.broadcast %291 : f32 to vector<16x16xf32>
      %294 = arith.mulf %293, %292 : vector<16x16xf32>
      %295 = arith.addf %290, %294 : vector<16x16xf32>
      %c48 = arith.constant 48 : index
      %296 = memref.load %arg3[%c48] : memref<98xf32, #tpu.memory_space<smem>>
      %c6_150 = arith.constant 6 : index
      %c0_151 = arith.constant 0 : index
      %297 = vector.load %arg7[%c6_150, %c0_151] : memref<22x16xf32, #tpu.memory_space<vmem>>, vector<16x16xf32>
      %298 = vector.broadcast %296 : f32 to vector<16x16xf32>
      %299 = arith.mulf %298, %297 : vector<16x16xf32>
      %300 = arith.addf %295, %299 : vector<16x16xf32>
      %c1_152 = arith.constant 1 : index
      %c0_153 = arith.constant 0 : index
      %c0_154 = arith.constant 0 : index
      %301 = vector.load %arg6[%c1_152, %c0_153, %c0_154] : memref<2x22x22xf32, #tpu.memory_space<vmem>>, vector<1x22x22xf32>
      %302 = vector.shape_cast %301 : vector<1x22x22xf32> to vector<22x22xf32>
      %303 = vector.extract_strided_slice %302 {offsets = [0, 0], sizes = [22, 16], strides = [1, 1]} : vector<22x22xf32> to vector<22x16xf32>
      %c0_155 = arith.constant 0 : index
      %c0_156 = arith.constant 0 : index
      %304 = vector.load %arg7[%c0_155, %c0_156] : memref<22x16xf32, #tpu.memory_space<vmem>>, vector<22x16xf32>
      tpu.vector_store %arg7[%c0_155, %c0_156], %303 {strides = array<i32>} : memref<22x16xf32, #tpu.memory_space<vmem>>, vector<22x16xf32>,
      %c49 = arith.constant 49 : index
      %305 = memref.load %arg3[%c49] : memref<98xf32, #tpu.memory_space<smem>>
      %c0_157 = arith.constant 0 : index
      %c0_158 = arith.constant 0 : index
      %306 = vector.load %arg7[%c0_157, %c0_158] : memref<22x16xf32, #tpu.memory_space<vmem>>, vector<16x16xf32>
      %307 = vector.broadcast %305 : f32 to vector<16x16xf32>
      %308 = arith.mulf %307, %306 : vector<16x16xf32>
      %309 = arith.addf %300, %308 : vector<16x16xf32>
      %c56 = arith.constant 56 : index
      %310 = memref.load %arg3[%c56] : memref<98xf32, #tpu.memory_space<smem>>
      %c1_159 = arith.constant 1 : index
      %c0_160 = arith.constant 0 : index
      %311 = vector.load %arg7[%c1_159, %c0_160] : memref<22x16xf32, #tpu.memory_space<vmem>>, vector<16x16xf32>
      %312 = vector.broadcast %310 : f32 to vector<16x16xf32>
      %313 = arith.mulf %312, %311 : vector<16x16xf32>
      %314 = arith.addf %309, %313 : vector<16x16xf32>
      %c63 = arith.constant 63 : index
      %315 = memref.load %arg3[%c63] : memref<98xf32, #tpu.memory_space<smem>>
      %c2_161 = arith.constant 2 : index
      %c0_162 = arith.constant 0 : index
      %316 = vector.load %arg7[%c2_161, %c0_162] : memref<22x16xf32, #tpu.memory_space<vmem>>, vector<16x16xf32>
      %317 = vector.broadcast %315 : f32 to vector<16x16xf32>
      %318 = arith.mulf %317, %316 : vector<16x16xf32>
      %319 = arith.addf %314, %318 : vector<16x16xf32>
      %c70 = arith.constant 70 : index
      %320 = memref.load %arg3[%c70] : memref<98xf32, #tpu.memory_space<smem>>
      %c3_163 = arith.constant 3 : index
      %c0_164 = arith.constant 0 : index
      %321 = vector.load %arg7[%c3_163, %c0_164] : memref<22x16xf32, #tpu.memory_space<vmem>>, vector<16x16xf32>
      %322 = vector.broadcast %320 : f32 to vector<16x16xf32>
      %323 = arith.mulf %322, %321 : vector<16x16xf32>
      %324 = arith.addf %319, %323 : vector<16x16xf32>
      %c77 = arith.constant 77 : index
      %325 = memref.load %arg3[%c77] : memref<98xf32, #tpu.memory_space<smem>>
      %c4_165 = arith.constant 4 : index
      %c0_166 = arith.constant 0 : index
      %326 = vector.load %arg7[%c4_165, %c0_166] : memref<22x16xf32, #tpu.memory_space<vmem>>, vector<16x16xf32>
      %327 = vector.broadcast %325 : f32 to vector<16x16xf32>
      %328 = arith.mulf %327, %326 : vector<16x16xf32>
      %329 = arith.addf %324, %328 : vector<16x16xf32>
      %c84 = arith.constant 84 : index
      %330 = memref.load %arg3[%c84] : memref<98xf32, #tpu.memory_space<smem>>
      %c5_167 = arith.constant 5 : index
      %c0_168 = arith.constant 0 : index
      %331 = vector.load %arg7[%c5_167, %c0_168] : memref<22x16xf32, #tpu.memory_space<vmem>>, vector<16x16xf32>
      %332 = vector.broadcast %330 : f32 to vector<16x16xf32>
      %333 = arith.mulf %332, %331 : vector<16x16xf32>
      %334 = arith.addf %329, %333 : vector<16x16xf32>
      %c91 = arith.constant 91 : index
      %335 = memref.load %arg3[%c91] : memref<98xf32, #tpu.memory_space<smem>>
      %c6_169 = arith.constant 6 : index
      %c0_170 = arith.constant 0 : index
      %336 = vector.load %arg7[%c6_169, %c0_170] : memref<22x16xf32, #tpu.memory_space<vmem>>, vector<16x16xf32>
      %337 = vector.broadcast %335 : f32 to vector<16x16xf32>
      %338 = arith.mulf %337, %336 : vector<16x16xf32>
      %339 = arith.addf %334, %338 : vector<16x16xf32>
      %340 = vector.extract_strided_slice %302 {offsets = [0, 1], sizes = [22, 16], strides = [1, 1]} : vector<22x22xf32> to vector<22x16xf32>
      %c0_171 = arith.constant 0 : index
      %c0_172 = arith.constant 0 : index
      %341 = vector.load %arg7[%c0_171, %c0_172] : memref<22x16xf32, #tpu.memory_space<vmem>>, vector<22x16xf32>
      tpu.vector_store %arg7[%c0_171, %c0_172], %340 {strides = array<i32>} : memref<22x16xf32, #tpu.memory_space<vmem>>, vector<22x16xf32>,
      %c50 = arith.constant 50 : index
      %342 = memref.load %arg3[%c50] : memref<98xf32, #tpu.memory_space<smem>>
      %c0_173 = arith.constant 0 : index
      %c0_174 = arith.constant 0 : index
      %343 = vector.load %arg7[%c0_173, %c0_174] : memref<22x16xf32, #tpu.memory_space<vmem>>, vector<16x16xf32>
      %344 = vector.broadcast %342 : f32 to vector<16x16xf32>
      %345 = arith.mulf %344, %343 : vector<16x16xf32>
      %346 = arith.addf %339, %345 : vector<16x16xf32>
      %c57 = arith.constant 57 : index
      %347 = memref.load %arg3[%c57] : memref<98xf32, #tpu.memory_space<smem>>
      %c1_175 = arith.constant 1 : index
      %c0_176 = arith.constant 0 : index
      %348 = vector.load %arg7[%c1_175, %c0_176] : memref<22x16xf32, #tpu.memory_space<vmem>>, vector<16x16xf32>
      %349 = vector.broadcast %347 : f32 to vector<16x16xf32>
      %350 = arith.mulf %349, %348 : vector<16x16xf32>
      %351 = arith.addf %346, %350 : vector<16x16xf32>
      %c64 = arith.constant 64 : index
      %352 = memref.load %arg3[%c64] : memref<98xf32, #tpu.memory_space<smem>>
      %c2_177 = arith.constant 2 : index
      %c0_178 = arith.constant 0 : index
      %353 = vector.load %arg7[%c2_177, %c0_178] : memref<22x16xf32, #tpu.memory_space<vmem>>, vector<16x16xf32>
      %354 = vector.broadcast %352 : f32 to vector<16x16xf32>
      %355 = arith.mulf %354, %353 : vector<16x16xf32>
      %356 = arith.addf %351, %355 : vector<16x16xf32>
      %c71 = arith.constant 71 : index
      %357 = memref.load %arg3[%c71] : memref<98xf32, #tpu.memory_space<smem>>
      %c3_179 = arith.constant 3 : index
      %c0_180 = arith.constant 0 : index
      %358 = vector.load %arg7[%c3_179, %c0_180] : memref<22x16xf32, #tpu.memory_space<vmem>>, vector<16x16xf32>
      %359 = vector.broadcast %357 : f32 to vector<16x16xf32>
      %360 = arith.mulf %359, %358 : vector<16x16xf32>
      %361 = arith.addf %356, %360 : vector<16x16xf32>
      %c78 = arith.constant 78 : index
      %362 = memref.load %arg3[%c78] : memref<98xf32, #tpu.memory_space<smem>>
      %c4_181 = arith.constant 4 : index
      %c0_182 = arith.constant 0 : index
      %363 = vector.load %arg7[%c4_181, %c0_182] : memref<22x16xf32, #tpu.memory_space<vmem>>, vector<16x16xf32>
      %364 = vector.broadcast %362 : f32 to vector<16x16xf32>
      %365 = arith.mulf %364, %363 : vector<16x16xf32>
      %366 = arith.addf %361, %365 : vector<16x16xf32>
      %c85 = arith.constant 85 : index
      %367 = memref.load %arg3[%c85] : memref<98xf32, #tpu.memory_space<smem>>
      %c5_183 = arith.constant 5 : index
      %c0_184 = arith.constant 0 : index
      %368 = vector.load %arg7[%c5_183, %c0_184] : memref<22x16xf32, #tpu.memory_space<vmem>>, vector<16x16xf32>
      %369 = vector.broadcast %367 : f32 to vector<16x16xf32>
      %370 = arith.mulf %369, %368 : vector<16x16xf32>
      %371 = arith.addf %366, %370 : vector<16x16xf32>
      %c92 = arith.constant 92 : index
      %372 = memref.load %arg3[%c92] : memref<98xf32, #tpu.memory_space<smem>>
      %c6_185 = arith.constant 6 : index
      %c0_186 = arith.constant 0 : index
      %373 = vector.load %arg7[%c6_185, %c0_186] : memref<22x16xf32, #tpu.memory_space<vmem>>, vector<16x16xf32>
      %374 = vector.broadcast %372 : f32 to vector<16x16xf32>
      %375 = arith.mulf %374, %373 : vector<16x16xf32>
      %376 = arith.addf %371, %375 : vector<16x16xf32>
      %377 = vector.extract_strided_slice %302 {offsets = [0, 2], sizes = [22, 16], strides = [1, 1]} : vector<22x22xf32> to vector<22x16xf32>
      %c0_187 = arith.constant 0 : index
      %c0_188 = arith.constant 0 : index
      %378 = vector.load %arg7[%c0_187, %c0_188] : memref<22x16xf32, #tpu.memory_space<vmem>>, vector<22x16xf32>
      tpu.vector_store %arg7[%c0_187, %c0_188], %377 {strides = array<i32>} : memref<22x16xf32, #tpu.memory_space<vmem>>, vector<22x16xf32>,
      %c51 = arith.constant 51 : index
      %379 = memref.load %arg3[%c51] : memref<98xf32, #tpu.memory_space<smem>>
      %c0_189 = arith.constant 0 : index
      %c0_190 = arith.constant 0 : index
      %380 = vector.load %arg7[%c0_189, %c0_190] : memref<22x16xf32, #tpu.memory_space<vmem>>, vector<16x16xf32>
      %381 = vector.broadcast %379 : f32 to vector<16x16xf32>
      %382 = arith.mulf %381, %380 : vector<16x16xf32>
      %383 = arith.addf %376, %382 : vector<16x16xf32>
      %c58 = arith.constant 58 : index
      %384 = memref.load %arg3[%c58] : memref<98xf32, #tpu.memory_space<smem>>
      %c1_191 = arith.constant 1 : index
      %c0_192 = arith.constant 0 : index
      %385 = vector.load %arg7[%c1_191, %c0_192] : memref<22x16xf32, #tpu.memory_space<vmem>>, vector<16x16xf32>
      %386 = vector.broadcast %384 : f32 to vector<16x16xf32>
      %387 = arith.mulf %386, %385 : vector<16x16xf32>
      %388 = arith.addf %383, %387 : vector<16x16xf32>
      %c65 = arith.constant 65 : index
      %389 = memref.load %arg3[%c65] : memref<98xf32, #tpu.memory_space<smem>>
      %c2_193 = arith.constant 2 : index
      %c0_194 = arith.constant 0 : index
      %390 = vector.load %arg7[%c2_193, %c0_194] : memref<22x16xf32, #tpu.memory_space<vmem>>, vector<16x16xf32>
      %391 = vector.broadcast %389 : f32 to vector<16x16xf32>
      %392 = arith.mulf %391, %390 : vector<16x16xf32>
      %393 = arith.addf %388, %392 : vector<16x16xf32>
      %c72 = arith.constant 72 : index
      %394 = memref.load %arg3[%c72] : memref<98xf32, #tpu.memory_space<smem>>
      %c3_195 = arith.constant 3 : index
      %c0_196 = arith.constant 0 : index
      %395 = vector.load %arg7[%c3_195, %c0_196] : memref<22x16xf32, #tpu.memory_space<vmem>>, vector<16x16xf32>
      %396 = vector.broadcast %394 : f32 to vector<16x16xf32>
      %397 = arith.mulf %396, %395 : vector<16x16xf32>
      %398 = arith.addf %393, %397 : vector<16x16xf32>
      %c79 = arith.constant 79 : index
      %399 = memref.load %arg3[%c79] : memref<98xf32, #tpu.memory_space<smem>>
      %c4_197 = arith.constant 4 : index
      %c0_198 = arith.constant 0 : index
      %400 = vector.load %arg7[%c4_197, %c0_198] : memref<22x16xf32, #tpu.memory_space<vmem>>, vector<16x16xf32>
      %401 = vector.broadcast %399 : f32 to vector<16x16xf32>
      %402 = arith.mulf %401, %400 : vector<16x16xf32>
      %403 = arith.addf %398, %402 : vector<16x16xf32>
      %c86 = arith.constant 86 : index
      %404 = memref.load %arg3[%c86] : memref<98xf32, #tpu.memory_space<smem>>
      %c5_199 = arith.constant 5 : index
      %c0_200 = arith.constant 0 : index
      %405 = vector.load %arg7[%c5_199, %c0_200] : memref<22x16xf32, #tpu.memory_space<vmem>>, vector<16x16xf32>
      %406 = vector.broadcast %404 : f32 to vector<16x16xf32>
      %407 = arith.mulf %406, %405 : vector<16x16xf32>
      %408 = arith.addf %403, %407 : vector<16x16xf32>
      %c93 = arith.constant 93 : index
      %409 = memref.load %arg3[%c93] : memref<98xf32, #tpu.memory_space<smem>>
      %c6_201 = arith.constant 6 : index
      %c0_202 = arith.constant 0 : index
      %410 = vector.load %arg7[%c6_201, %c0_202] : memref<22x16xf32, #tpu.memory_space<vmem>>, vector<16x16xf32>
      %411 = vector.broadcast %409 : f32 to vector<16x16xf32>
      %412 = arith.mulf %411, %410 : vector<16x16xf32>
      %413 = arith.addf %408, %412 : vector<16x16xf32>
      %414 = vector.extract_strided_slice %302 {offsets = [0, 3], sizes = [22, 16], strides = [1, 1]} : vector<22x22xf32> to vector<22x16xf32>
      %c0_203 = arith.constant 0 : index
      %c0_204 = arith.constant 0 : index
      %415 = vector.load %arg7[%c0_203, %c0_204] : memref<22x16xf32, #tpu.memory_space<vmem>>, vector<22x16xf32>
      tpu.vector_store %arg7[%c0_203, %c0_204], %414 {strides = array<i32>} : memref<22x16xf32, #tpu.memory_space<vmem>>, vector<22x16xf32>,
      %c52 = arith.constant 52 : index
      %416 = memref.load %arg3[%c52] : memref<98xf32, #tpu.memory_space<smem>>
      %c0_205 = arith.constant 0 : index
      %c0_206 = arith.constant 0 : index
      %417 = vector.load %arg7[%c0_205, %c0_206] : memref<22x16xf32, #tpu.memory_space<vmem>>, vector<16x16xf32>
      %418 = vector.broadcast %416 : f32 to vector<16x16xf32>
      %419 = arith.mulf %418, %417 : vector<16x16xf32>
      %420 = arith.addf %413, %419 : vector<16x16xf32>
      %c59 = arith.constant 59 : index
      %421 = memref.load %arg3[%c59] : memref<98xf32, #tpu.memory_space<smem>>
      %c1_207 = arith.constant 1 : index
      %c0_208 = arith.constant 0 : index
      %422 = vector.load %arg7[%c1_207, %c0_208] : memref<22x16xf32, #tpu.memory_space<vmem>>, vector<16x16xf32>
      %423 = vector.broadcast %421 : f32 to vector<16x16xf32>
      %424 = arith.mulf %423, %422 : vector<16x16xf32>
      %425 = arith.addf %420, %424 : vector<16x16xf32>
      %c66 = arith.constant 66 : index
      %426 = memref.load %arg3[%c66] : memref<98xf32, #tpu.memory_space<smem>>
      %c2_209 = arith.constant 2 : index
      %c0_210 = arith.constant 0 : index
      %427 = vector.load %arg7[%c2_209, %c0_210] : memref<22x16xf32, #tpu.memory_space<vmem>>, vector<16x16xf32>
      %428 = vector.broadcast %426 : f32 to vector<16x16xf32>
      %429 = arith.mulf %428, %427 : vector<16x16xf32>
      %430 = arith.addf %425, %429 : vector<16x16xf32>
      %c73 = arith.constant 73 : index
      %431 = memref.load %arg3[%c73] : memref<98xf32, #tpu.memory_space<smem>>
      %c3_211 = arith.constant 3 : index
      %c0_212 = arith.constant 0 : index
      %432 = vector.load %arg7[%c3_211, %c0_212] : memref<22x16xf32, #tpu.memory_space<vmem>>, vector<16x16xf32>
      %433 = vector.broadcast %431 : f32 to vector<16x16xf32>
      %434 = arith.mulf %433, %432 : vector<16x16xf32>
      %435 = arith.addf %430, %434 : vector<16x16xf32>
      %c80 = arith.constant 80 : index
      %436 = memref.load %arg3[%c80] : memref<98xf32, #tpu.memory_space<smem>>
      %c4_213 = arith.constant 4 : index
      %c0_214 = arith.constant 0 : index
      %437 = vector.load %arg7[%c4_213, %c0_214] : memref<22x16xf32, #tpu.memory_space<vmem>>, vector<16x16xf32>
      %438 = vector.broadcast %436 : f32 to vector<16x16xf32>
      %439 = arith.mulf %438, %437 : vector<16x16xf32>
      %440 = arith.addf %435, %439 : vector<16x16xf32>
      %c87 = arith.constant 87 : index
      %441 = memref.load %arg3[%c87] : memref<98xf32, #tpu.memory_space<smem>>
      %c5_215 = arith.constant 5 : index
      %c0_216 = arith.constant 0 : index
      %442 = vector.load %arg7[%c5_215, %c0_216] : memref<22x16xf32, #tpu.memory_space<vmem>>, vector<16x16xf32>
      %443 = vector.broadcast %441 : f32 to vector<16x16xf32>
      %444 = arith.mulf %443, %442 : vector<16x16xf32>
      %445 = arith.addf %440, %444 : vector<16x16xf32>
      %c94 = arith.constant 94 : index
      %446 = memref.load %arg3[%c94] : memref<98xf32, #tpu.memory_space<smem>>
      %c6_217 = arith.constant 6 : index
      %c0_218 = arith.constant 0 : index
      %447 = vector.load %arg7[%c6_217, %c0_218] : memref<22x16xf32, #tpu.memory_space<vmem>>, vector<16x16xf32>
      %448 = vector.broadcast %446 : f32 to vector<16x16xf32>
      %449 = arith.mulf %448, %447 : vector<16x16xf32>
      %450 = arith.addf %445, %449 : vector<16x16xf32>
      %451 = vector.extract_strided_slice %302 {offsets = [0, 4], sizes = [22, 16], strides = [1, 1]} : vector<22x22xf32> to vector<22x16xf32>
      %c0_219 = arith.constant 0 : index
      %c0_220 = arith.constant 0 : index
      %452 = vector.load %arg7[%c0_219, %c0_220] : memref<22x16xf32, #tpu.memory_space<vmem>>, vector<22x16xf32>
      tpu.vector_store %arg7[%c0_219, %c0_220], %451 {strides = array<i32>} : memref<22x16xf32, #tpu.memory_space<vmem>>, vector<22x16xf32>,
      %c53 = arith.constant 53 : index
      %453 = memref.load %arg3[%c53] : memref<98xf32, #tpu.memory_space<smem>>
      %c0_221 = arith.constant 0 : index
      %c0_222 = arith.constant 0 : index
      %454 = vector.load %arg7[%c0_221, %c0_222] : memref<22x16xf32, #tpu.memory_space<vmem>>, vector<16x16xf32>
      %455 = vector.broadcast %453 : f32 to vector<16x16xf32>
      %456 = arith.mulf %455, %454 : vector<16x16xf32>
      %457 = arith.addf %450, %456 : vector<16x16xf32>
      %c60 = arith.constant 60 : index
      %458 = memref.load %arg3[%c60] : memref<98xf32, #tpu.memory_space<smem>>
      %c1_223 = arith.constant 1 : index
      %c0_224 = arith.constant 0 : index
      %459 = vector.load %arg7[%c1_223, %c0_224] : memref<22x16xf32, #tpu.memory_space<vmem>>, vector<16x16xf32>
      %460 = vector.broadcast %458 : f32 to vector<16x16xf32>
      %461 = arith.mulf %460, %459 : vector<16x16xf32>
      %462 = arith.addf %457, %461 : vector<16x16xf32>
      %c67 = arith.constant 67 : index
      %463 = memref.load %arg3[%c67] : memref<98xf32, #tpu.memory_space<smem>>
      %c2_225 = arith.constant 2 : index
      %c0_226 = arith.constant 0 : index
      %464 = vector.load %arg7[%c2_225, %c0_226] : memref<22x16xf32, #tpu.memory_space<vmem>>, vector<16x16xf32>
      %465 = vector.broadcast %463 : f32 to vector<16x16xf32>
      %466 = arith.mulf %465, %464 : vector<16x16xf32>
      %467 = arith.addf %462, %466 : vector<16x16xf32>
      %c74 = arith.constant 74 : index
      %468 = memref.load %arg3[%c74] : memref<98xf32, #tpu.memory_space<smem>>
      %c3_227 = arith.constant 3 : index
      %c0_228 = arith.constant 0 : index
      %469 = vector.load %arg7[%c3_227, %c0_228] : memref<22x16xf32, #tpu.memory_space<vmem>>, vector<16x16xf32>
      %470 = vector.broadcast %468 : f32 to vector<16x16xf32>
      %471 = arith.mulf %470, %469 : vector<16x16xf32>
      %472 = arith.addf %467, %471 : vector<16x16xf32>
      %c81 = arith.constant 81 : index
      %473 = memref.load %arg3[%c81] : memref<98xf32, #tpu.memory_space<smem>>
      %c4_229 = arith.constant 4 : index
      %c0_230 = arith.constant 0 : index
      %474 = vector.load %arg7[%c4_229, %c0_230] : memref<22x16xf32, #tpu.memory_space<vmem>>, vector<16x16xf32>
      %475 = vector.broadcast %473 : f32 to vector<16x16xf32>
      %476 = arith.mulf %475, %474 : vector<16x16xf32>
      %477 = arith.addf %472, %476 : vector<16x16xf32>
      %c88 = arith.constant 88 : index
      %478 = memref.load %arg3[%c88] : memref<98xf32, #tpu.memory_space<smem>>
      %c5_231 = arith.constant 5 : index
      %c0_232 = arith.constant 0 : index
      %479 = vector.load %arg7[%c5_231, %c0_232] : memref<22x16xf32, #tpu.memory_space<vmem>>, vector<16x16xf32>
      %480 = vector.broadcast %478 : f32 to vector<16x16xf32>
      %481 = arith.mulf %480, %479 : vector<16x16xf32>
      %482 = arith.addf %477, %481 : vector<16x16xf32>
      %c95 = arith.constant 95 : index
      %483 = memref.load %arg3[%c95] : memref<98xf32, #tpu.memory_space<smem>>
      %c6_233 = arith.constant 6 : index
      %c0_234 = arith.constant 0 : index
      %484 = vector.load %arg7[%c6_233, %c0_234] : memref<22x16xf32, #tpu.memory_space<vmem>>, vector<16x16xf32>
      %485 = vector.broadcast %483 : f32 to vector<16x16xf32>
      %486 = arith.mulf %485, %484 : vector<16x16xf32>
      %487 = arith.addf %482, %486 : vector<16x16xf32>
      %488 = vector.extract_strided_slice %302 {offsets = [0, 5], sizes = [22, 16], strides = [1, 1]} : vector<22x22xf32> to vector<22x16xf32>
      %c0_235 = arith.constant 0 : index
      %c0_236 = arith.constant 0 : index
      %489 = vector.load %arg7[%c0_235, %c0_236] : memref<22x16xf32, #tpu.memory_space<vmem>>, vector<22x16xf32>
      tpu.vector_store %arg7[%c0_235, %c0_236], %488 {strides = array<i32>} : memref<22x16xf32, #tpu.memory_space<vmem>>, vector<22x16xf32>,
      %c54 = arith.constant 54 : index
      %490 = memref.load %arg3[%c54] : memref<98xf32, #tpu.memory_space<smem>>
      %c0_237 = arith.constant 0 : index
      %c0_238 = arith.constant 0 : index
      %491 = vector.load %arg7[%c0_237, %c0_238] : memref<22x16xf32, #tpu.memory_space<vmem>>, vector<16x16xf32>
      %492 = vector.broadcast %490 : f32 to vector<16x16xf32>
      %493 = arith.mulf %492, %491 : vector<16x16xf32>
      %494 = arith.addf %487, %493 : vector<16x16xf32>
      %c61 = arith.constant 61 : index
      %495 = memref.load %arg3[%c61] : memref<98xf32, #tpu.memory_space<smem>>
      %c1_239 = arith.constant 1 : index
      %c0_240 = arith.constant 0 : index
      %496 = vector.load %arg7[%c1_239, %c0_240] : memref<22x16xf32, #tpu.memory_space<vmem>>, vector<16x16xf32>
      %497 = vector.broadcast %495 : f32 to vector<16x16xf32>
      %498 = arith.mulf %497, %496 : vector<16x16xf32>
      %499 = arith.addf %494, %498 : vector<16x16xf32>
      %c68 = arith.constant 68 : index
      %500 = memref.load %arg3[%c68] : memref<98xf32, #tpu.memory_space<smem>>
      %c2_241 = arith.constant 2 : index
      %c0_242 = arith.constant 0 : index
      %501 = vector.load %arg7[%c2_241, %c0_242] : memref<22x16xf32, #tpu.memory_space<vmem>>, vector<16x16xf32>
      %502 = vector.broadcast %500 : f32 to vector<16x16xf32>
      %503 = arith.mulf %502, %501 : vector<16x16xf32>
      %504 = arith.addf %499, %503 : vector<16x16xf32>
      %c75 = arith.constant 75 : index
      %505 = memref.load %arg3[%c75] : memref<98xf32, #tpu.memory_space<smem>>
      %c3_243 = arith.constant 3 : index
      %c0_244 = arith.constant 0 : index
      %506 = vector.load %arg7[%c3_243, %c0_244] : memref<22x16xf32, #tpu.memory_space<vmem>>, vector<16x16xf32>
      %507 = vector.broadcast %505 : f32 to vector<16x16xf32>
      %508 = arith.mulf %507, %506 : vector<16x16xf32>
      %509 = arith.addf %504, %508 : vector<16x16xf32>
      %c82 = arith.constant 82 : index
      %510 = memref.load %arg3[%c82] : memref<98xf32, #tpu.memory_space<smem>>
      %c4_245 = arith.constant 4 : index
      %c0_246 = arith.constant 0 : index
      %511 = vector.load %arg7[%c4_245, %c0_246] : memref<22x16xf32, #tpu.memory_space<vmem>>, vector<16x16xf32>
      %512 = vector.broadcast %510 : f32 to vector<16x16xf32>
      %513 = arith.mulf %512, %511 : vector<16x16xf32>
      %514 = arith.addf %509, %513 : vector<16x16xf32>
      %c89 = arith.constant 89 : index
      %515 = memref.load %arg3[%c89] : memref<98xf32, #tpu.memory_space<smem>>
      %c5_247 = arith.constant 5 : index
      %c0_248 = arith.constant 0 : index
      %516 = vector.load %arg7[%c5_247, %c0_248] : memref<22x16xf32, #tpu.memory_space<vmem>>, vector<16x16xf32>
      %517 = vector.broadcast %515 : f32 to vector<16x16xf32>
      %518 = arith.mulf %517, %516 : vector<16x16xf32>
      %519 = arith.addf %514, %518 : vector<16x16xf32>
      %c96 = arith.constant 96 : index
      %520 = memref.load %arg3[%c96] : memref<98xf32, #tpu.memory_space<smem>>
      %c6_249 = arith.constant 6 : index
      %c0_250 = arith.constant 0 : index
      %521 = vector.load %arg7[%c6_249, %c0_250] : memref<22x16xf32, #tpu.memory_space<vmem>>, vector<16x16xf32>
      %522 = vector.broadcast %520 : f32 to vector<16x16xf32>
      %523 = arith.mulf %522, %521 : vector<16x16xf32>
      %524 = arith.addf %519, %523 : vector<16x16xf32>
      %525 = vector.extract_strided_slice %302 {offsets = [0, 6], sizes = [22, 16], strides = [1, 1]} : vector<22x22xf32> to vector<22x16xf32>
      %c0_251 = arith.constant 0 : index
      %c0_252 = arith.constant 0 : index
      %526 = vector.load %arg7[%c0_251, %c0_252] : memref<22x16xf32, #tpu.memory_space<vmem>>, vector<22x16xf32>
      tpu.vector_store %arg7[%c0_251, %c0_252], %525 {strides = array<i32>} : memref<22x16xf32, #tpu.memory_space<vmem>>, vector<22x16xf32>,
      %c55 = arith.constant 55 : index
      %527 = memref.load %arg3[%c55] : memref<98xf32, #tpu.memory_space<smem>>
      %c0_253 = arith.constant 0 : index
      %c0_254 = arith.constant 0 : index
      %528 = vector.load %arg7[%c0_253, %c0_254] : memref<22x16xf32, #tpu.memory_space<vmem>>, vector<16x16xf32>
      %529 = vector.broadcast %527 : f32 to vector<16x16xf32>
      %530 = arith.mulf %529, %528 : vector<16x16xf32>
      %531 = arith.addf %524, %530 : vector<16x16xf32>
      %c62 = arith.constant 62 : index
      %532 = memref.load %arg3[%c62] : memref<98xf32, #tpu.memory_space<smem>>
      %c1_255 = arith.constant 1 : index
      %c0_256 = arith.constant 0 : index
      %533 = vector.load %arg7[%c1_255, %c0_256] : memref<22x16xf32, #tpu.memory_space<vmem>>, vector<16x16xf32>
      %534 = vector.broadcast %532 : f32 to vector<16x16xf32>
      %535 = arith.mulf %534, %533 : vector<16x16xf32>
      %536 = arith.addf %531, %535 : vector<16x16xf32>
      %c69 = arith.constant 69 : index
      %537 = memref.load %arg3[%c69] : memref<98xf32, #tpu.memory_space<smem>>
      %c2_257 = arith.constant 2 : index
      %c0_258 = arith.constant 0 : index
      %538 = vector.load %arg7[%c2_257, %c0_258] : memref<22x16xf32, #tpu.memory_space<vmem>>, vector<16x16xf32>
      %539 = vector.broadcast %537 : f32 to vector<16x16xf32>
      %540 = arith.mulf %539, %538 : vector<16x16xf32>
      %541 = arith.addf %536, %540 : vector<16x16xf32>
      %c76 = arith.constant 76 : index
      %542 = memref.load %arg3[%c76] : memref<98xf32, #tpu.memory_space<smem>>
      %c3_259 = arith.constant 3 : index
      %c0_260 = arith.constant 0 : index
      %543 = vector.load %arg7[%c3_259, %c0_260] : memref<22x16xf32, #tpu.memory_space<vmem>>, vector<16x16xf32>
      %544 = vector.broadcast %542 : f32 to vector<16x16xf32>
      %545 = arith.mulf %544, %543 : vector<16x16xf32>
      %546 = arith.addf %541, %545 : vector<16x16xf32>
      %c83 = arith.constant 83 : index
      %547 = memref.load %arg3[%c83] : memref<98xf32, #tpu.memory_space<smem>>
      %c4_261 = arith.constant 4 : index
      %c0_262 = arith.constant 0 : index
      %548 = vector.load %arg7[%c4_261, %c0_262] : memref<22x16xf32, #tpu.memory_space<vmem>>, vector<16x16xf32>
      %549 = vector.broadcast %547 : f32 to vector<16x16xf32>
      %550 = arith.mulf %549, %548 : vector<16x16xf32>
      %551 = arith.addf %546, %550 : vector<16x16xf32>
      %c90 = arith.constant 90 : index
      %552 = memref.load %arg3[%c90] : memref<98xf32, #tpu.memory_space<smem>>
      %c5_263 = arith.constant 5 : index
      %c0_264 = arith.constant 0 : index
      %553 = vector.load %arg7[%c5_263, %c0_264] : memref<22x16xf32, #tpu.memory_space<vmem>>, vector<16x16xf32>
      %554 = vector.broadcast %552 : f32 to vector<16x16xf32>
      %555 = arith.mulf %554, %553 : vector<16x16xf32>
      %556 = arith.addf %551, %555 : vector<16x16xf32>
      %c97 = arith.constant 97 : index
      %557 = memref.load %arg3[%c97] : memref<98xf32, #tpu.memory_space<smem>>
      %c6_265 = arith.constant 6 : index
      %c0_266 = arith.constant 0 : index
      %558 = vector.load %arg7[%c6_265, %c0_266] : memref<22x16xf32, #tpu.memory_space<vmem>>, vector<16x16xf32>
      %559 = vector.broadcast %557 : f32 to vector<16x16xf32>
      %560 = arith.mulf %559, %558 : vector<16x16xf32>
      %561 = arith.addf %556, %560 : vector<16x16xf32>
      %562 = arith.negf %561 : vector<16x16xf32>
      %563 = math.exp %562 : vector<16x16xf32>
      %cst_267 = arith.constant 1.000000e+00 : f32
      %564 = vector.broadcast %cst_267 : f32 to vector<16x16xf32>
      %565 = arith.addf %564, %563 : vector<16x16xf32>
      %566 = arith.divf %564, %565 : vector<16x16xf32>
      %c0_268 = arith.constant 0 : index
      %c0_269 = arith.constant 0 : index
      %c0_270 = arith.constant 0 : index
      %567 = vector.load %arg4[%c0_268, %c0_269, %c0_270] : memref<1x16x16xf32, #tpu.memory_space<vmem>>, vector<1x16x16xf32>
      %568 = vector.shape_cast %567 : vector<1x16x16xf32> to vector<16x16xf32>
      %569 = vector.shape_cast %566 : vector<16x16xf32> to vector<1x16x16xf32>
      tpu.vector_store %arg4[%c0_268, %c0_269, %c0_270], %569 {strides = array<i32>} : memref<1x16x16xf32, #tpu.memory_space<vmem>>, vector<1x16x16xf32>,
    } else {
    }
    return
  }
  func.func @transform_0(%arg0: i32, %arg1: i32) -> (i32, i32, i32, i32) {
    %c0_i32 = arith.constant 0 : i32
    %c0_i32_0 = arith.constant 0 : i32
    %c0_i32_1 = arith.constant 0 : i32
    return %arg0, %arg1, %c0_i32, %c0_i32_0 : i32, i32, i32, i32
  }
  func.func @transform_1(%arg0: i32, %arg1: i32) -> i32 {
    %c0_i32 = arith.constant 0 : i32
    %c0_i32_0 = arith.constant 0 : i32
    return %c0_i32 : i32
  }
  func.func @transform_2(%arg0: i32, %arg1: i32) -> (i32, i32, i32) {
    %c0_i32 = arith.constant 0 : i32
    %c0_i32_0 = arith.constant 0 : i32
    %c0_i32_1 = arith.constant 0 : i32
    return %arg0, %c0_i32, %c0_i32_0 : i32, i32, i32
  }
}

module attributes {stable_mosaic.version = 11 : i64} {
  func.func @_gate_kernel(%arg0: i32, %arg1: i32, %arg2: i32, %arg3: memref<1x4x256xf32, #tpu.memory_space<vmem>>, %arg4: memref<1x1x256xf32, #tpu.memory_space<vmem>>, %arg5: memref<1x4x256xf32, #tpu.memory_space<vmem>>) attributes {dimension_semantics = [#tpu.dimension_semantics<parallel>, #tpu.dimension_semantics<parallel>, #tpu.dimension_semantics<parallel>], iteration_bounds = array<i64: 2, 1, 1>, scalar_prefetch = 0 : i64, scratch_operands = 0 : i64, tpu.core_type = #tpu.core_type<tc>, window_params = [{transform_indices = @transform_0, window_bounds = array<i64: 1, 4, 256>}, {transform_indices = @transform_1, window_bounds = array<i64: 1, 1, 256>}, {transform_indices = @transform_2, window_bounds = array<i64: 1, 4, 256>}]} {
    %c0 = arith.constant 0 : index
    %c0_0 = arith.constant 0 : index
    %c0_1 = arith.constant 0 : index
    %0 = vector.load %arg3[%c0, %c0_0, %c0_1] : memref<1x4x256xf32, #tpu.memory_space<vmem>>, vector<1x4x256xf32>
    %c0_2 = arith.constant 0 : index
    %c0_3 = arith.constant 0 : index
    %c0_4 = arith.constant 0 : index
    %1 = vector.load %arg4[%c0_2, %c0_3, %c0_4] : memref<1x1x256xf32, #tpu.memory_space<vmem>>, vector<1x1x256xf32>
    %2 = vector.broadcast %1 : vector<1x1x256xf32> to vector<1x4x256xf32>
    %3 = arith.mulf %0, %2 : vector<1x4x256xf32>
    %c0_5 = arith.constant 0 : index
    %c0_6 = arith.constant 0 : index
    %c0_7 = arith.constant 0 : index
    %4 = vector.load %arg5[%c0_5, %c0_6, %c0_7] : memref<1x4x256xf32, #tpu.memory_space<vmem>>, vector<1x4x256xf32>
    tpu.vector_store %arg5[%c0_5, %c0_6, %c0_7], %3 {strides = array<i32>} : memref<1x4x256xf32, #tpu.memory_space<vmem>>, vector<1x4x256xf32>,
    return
  }
  func.func @transform_0(%arg0: i32, %arg1: i32, %arg2: i32) -> (i32, i32, i32) {
    %c0_i32 = arith.constant 0 : i32
    return %arg0, %arg1, %arg2 : i32, i32, i32
  }
  func.func @transform_1(%arg0: i32, %arg1: i32, %arg2: i32) -> (i32, i32, i32) {
    %c0_i32 = arith.constant 0 : i32
    %c0_i32_0 = arith.constant 0 : i32
    return %arg0, %c0_i32, %arg2 : i32, i32, i32
  }
  func.func @transform_2(%arg0: i32, %arg1: i32, %arg2: i32) -> (i32, i32, i32) {
    %c0_i32 = arith.constant 0 : i32
    return %arg0, %arg1, %arg2 : i32, i32, i32
  }
}

</mosaic_0001>

<llo_original>
// kernel: spatial_attention.3
$region0: #{spatial_attention.3}
  #allocation0 [shape = 'u32[]', space=smem, size = 0x4, offset = 0x4, fixed_abs, tag = 'smem constant byte address 0x4 - core index']
  #allocation1 [shape = 'u32[144,128]{1,0:T(1,128)}', space=vmem, size = 0x12000, scoped, tag = 'internal scratch']
  %s0 = inlined_call_operand.vmem [shape: f32[2,4,256], index: 0, kind: input, shape index: {}]
  %s1 = inlined_call_operand.vmem [shape: f32[2,1,256], index: 1, kind: input, shape index: {}]
  %s2 = inlined_call_operand.vmem [shape: f32[2,4,256], index: 2, kind: output, shape index: {}]
  %s3 = sld [smem:[#allocation0]]
  $region41: #{spatial_attention.3} parent=0
    _
  %s5 = ssub.s32 1, %s3
  %s6 = scalar_select 0, %s5, %s3
  loop: start=0, step=1, limit=4
  $region2: #{spatial_attention.3} parent=0 // loop_pre_header
    _
  $region3: #{spatial_attention.3} parent=0 // loop_header
    %s8 = sphi 0, %s12
    %p9 = scmp.ge.s32.totalorder %s8, 4
    %s15 = sphi 0, %s34
    %s16 = sphi 0, %s30
    %s17 = sphi 0, %s26
    %s18 = sphi 0, %s15
    %s19 = sphi 0, %s16
    %s20 = sphi 0, %s17
    %s21 = sphi 0, %s18
    %s22 = sphi 0, %s19
    %s23 = sphi 0, %s20
    %s41 = sphi 0, %s43
    %s44 = sphi 0, %s41
    %s45 = sphi 0, %s44
    %s61 = sphi 0, %s45
    %s69 = sphi 0, %s71
    %s72 = sphi 0, %s69
    %s73 = sphi 0, %s72
    %s89 = sphi 0, %s73
    %s99 = sphi 0, %s101
    %s102 = sphi 0, %s99
    %s103 = sphi 0, %s102
    %s119 = sphi 0, %s103
  $region4: #{spatial_attention.3} parent=0 // loop_header_branch
    %11 = sbr.rel (%p9) target = $region8
  $region5: #{spatial_attention.3} parent=0 // loop_body
    %s13 = ssub.s32 %s8, 1
    %s14 = ssub.s32 %s8, 2
    %s24 = sadd.s32 1, %s17
    %p25 = scmp.ge.s32.totalorder %s24, 1
    %s26 = scalar_select %p25, 0, %s24
    %s27 = sadd.s32 1, %s16
    %s28 = scalar_select %p25, %s27, %s16
    %p29 = scmp.ge.s32.totalorder %s28, 1
    %s30 = scalar_select %p29, 0, %s28
    %s31 = sadd.s32 1, %s15
    %s32 = scalar_select %p29, %s31, %s15
    %p33 = scmp.ge.s32.totalorder %s32, 2
    %s34 = scalar_select %p33, 0, %s32
    %s35 = ssub.s32 %s15, %s34
    %s36 = ssub.s32 %s16, %s30
    %s37 = sor.u32 %s35, %s36
    %s38 = ssub.s32 %s17, %s26
    %s39 = sor.u32 %s37, %s38
    %p40 = scmp.eq.s32.totalorder %s39, 0
    %s42 = sadd.s32 %s41, 1
    %s43 = scalar_select %p40, %s41, %s42
    %p46 = pneg %p40
    %p47 = scmp.eq.s32.totalorder %s8, 1
    %p48 = por %p46, %p47
    %p49 = scmp.ne.s32.totalorder %s41, %s44
    %p50 = scmp.eq.s32.totalorder %s8, 0
    %p51 = por %p49, %p50
    %p52 = scmp.ne.s32.totalorder %s41, %s44
    %p53 = scmp.eq.s32.totalorder %s13, 1
    %p54 = por %p52, %p53
    %p55 = scmp.ne.s32.totalorder %s44, %s45
    %p56 = scmp.eq.s32.totalorder %s13, 0
    %p57 = por %p55, %p56
    %p58 = scmp.ne.s32.totalorder %s44, %s45
    %p59 = scmp.eq.s32.totalorder %s14, 1
    %p60 = por %p58, %p59
    %p62 = scmp.ne.s32.totalorder %s45, %s61
    %p63 = scmp.eq.s32.totalorder %s14, 0
    %p64 = por %p62, %p63
    %s65 = ssub.s32 %s15, %s34
    %s66 = ssub.s32 %s17, %s26
    %s67 = sor.u32 %s65, %s66
    %p68 = scmp.eq.s32.totalorder %s67, 0
    %s70 = sadd.s32 %s69, 1
    %s71 = scalar_select %p68, %s69, %s70
    %p74 = pneg %p68
    %p75 = scmp.eq.s32.totalorder %s8, 1
    %p76 = por %p74, %p75
    %p77 = scmp.ne.s32.totalorder %s69, %s72
    %p78 = scmp.eq.s32.totalorder %s8, 0
    %p79 = por %p77, %p78
    %p80 = scmp.ne.s32.totalorder %s69, %s72
    %p81 = scmp.eq.s32.totalorder %s13, 1
    %p82 = por %p80, %p81
    %p83 = scmp.ne.s32.totalorder %s72, %s73
    %p84 = scmp.eq.s32.totalorder %s13, 0
    %p85 = por %p83, %p84
    %p86 = scmp.ne.s32.totalorder %s72, %s73
    %p87 = scmp.eq.s32.totalorder %s14, 1
    %p88 = por %p86, %p87
    %p90 = scmp.ne.s32.totalorder %s73, %s89
    %p91 = scmp.eq.s32.totalorder %s14, 0
    %p92 = por %p90, %p91
    %s93 = ssub.s32 %s15, %s34
    %s94 = ssub.s32 %s16, %s30
    %s95 = sor.u32 %s93, %s94
    %s96 = ssub.s32 %s17, %s26
    %s97 = sor.u32 %s95, %s96
    %p98 = scmp.eq.s32.totalorder %s97, 0
    %s100 = sadd.s32 %s99, 1
    %s101 = scalar_select %p98, %s99, %s100
    %p104 = pneg %p98
    %p105 = scmp.eq.s32.totalorder %s8, 1
    %p106 = por %p104, %p105
    %p107 = scmp.ne.s32.totalorder %s99, %s102
    %p108 = scmp.eq.s32.totalorder %s8, 0
    %p109 = por %p107, %p108
    %p110 = scmp.ne.s32.totalorder %s99, %s102
    %p111 = scmp.eq.s32.totalorder %s13, 1
    %p112 = por %p110, %p111
    %p113 = scmp.ne.s32.totalorder %s102, %s103
    %p114 = scmp.eq.s32.totalorder %s13, 0
    %p115 = por %p113, %p114
    %p116 = scmp.ne.s32.totalorder %s102, %s103
    %p117 = scmp.eq.s32.totalorder %s14, 1
    %p118 = por %p116, %p117
    %p120 = scmp.ne.s32.totalorder %s103, %s119
    %p121 = scmp.eq.s32.totalorder %s14, 0
    %p122 = por %p120, %p121
    %p123 = scmp.le.s32.totalorder 1, %s8
    %p124 = scmp.lt.s32.totalorder %s8, 3
    %p125 = pnand %p123, %p124
    %p126 = pneg %p125
    // Predicated region
    $region9: #{spatial_attention.3} parent=5 // pred_check
      _
    $region10: #{spatial_attention.3} parent=5 // pred_check_branch
      %128 = sbr.rel (%p125) target = $region12
    $region11: #{spatial_attention.3} parent=5 // pred_region
      %s129 = ssub.s32 %s8, 1
    $region12: #{spatial_attention.3} parent=5 // pred_fallthru
      _
    %p130 = scmp.lt.s32.totalorder %s8, 2
    // Predicated region
    $region13: #{spatial_attention.3} parent=5 // pred_check
      %p131 = pneg %p130
    $region14: #{spatial_attention.3} parent=5 // pred_check_branch
      %133 = sbr.rel (%p131) target = $region16
    $region15: #{spatial_attention.3} parent=5 // pred_region
      // Predicated region
      $region17: #{spatial_attention.3} parent=15 // pred_check
        %p134 = pneg %p51
      $region18: #{spatial_attention.3} parent=15 // pred_check_branch
        %136 = sbr.rel (%p134) target = $region20
      $region19: #{spatial_attention.3} parent=15 // pred_region
        %s137 = smul.u32 2, %s17
        %p138 = scmp.lt.s32.totalorder %s15, 1
        %s139 = scalar_select %p138, %s15, 1
        %p140 = scmp.lt.s32.totalorder %s16, 0
        %s141 = scalar_select %p140, %s16, 0
        %p142 = scmp.lt.s32.totalorder %s137, 1
        %s143 = scalar_select %p142, %s137, 1
        %s144 = smul.addr %s141, 2
        %s145 = sadd.s32 %s143, %s144
        %s146 = smul.addr %s139, 2
        %s147 = sadd.s32 %s145, %s146
        %s148 = smul.addr %s147, 4
        %s149 = scalar_lea.vmem %s0, %s148
        %s150 = smul.u32 2, %s17
      $region20: #{spatial_attention.3} parent=15 // pred_fallthru
        _
      // Predicated region
      $region21: #{spatial_attention.3} parent=15 // pred_check
        %p151 = pneg %p79
      $region22: #{spatial_attention.3} parent=15 // pred_check_branch
        %153 = sbr.rel (%p151) target = $region24
      $region23: #{spatial_attention.3} parent=15 // pred_region
        %s154 = smul.u32 2, %s17
        %p155 = scmp.lt.s32.totalorder %s15, 1
        %s156 = scalar_select %p155, %s15, 1
        %p157 = scmp.lt.s32.totalorder %s154, 1
        %s158 = scalar_select %p157, %s154, 1
        %s159 = smul.addr %s156, 2
        %s160 = sadd.s32 %s158, %s159
        %s161 = scalar_lea.vmem %s1, %s160
        %s162 = smul.u32 2, %s17
      $region24: #{spatial_attention.3} parent=15 // pred_fallthru
        _
    $region16: #{spatial_attention.3} parent=5 // pred_fallthru
      _
    %p163 = scmp.le.s32.totalorder 1, %s8
    %p164 = scmp.lt.s32.totalorder %s8, 3
    %p165 = pnand %p163, %p164
    %p166 = pneg %p165
    // Predicated region
    $region25: #{spatial_attention.3} parent=5 // pred_check
      _
    $region26: #{spatial_attention.3} parent=5 // pred_check_branch
      %168 = sbr.rel (%p165) target = $region28
    $region27: #{spatial_attention.3} parent=5 // pred_region
      %s169 = ssub.s32 %s8, 1
      %s170 = smul.u32 2, %s20
      %p171 = scmp.lt.s32.totalorder %s18, 1
      %s172 = scalar_select %p171, %s18, 1
      %p173 = scmp.lt.s32.totalorder %s19, 0
      %s174 = scalar_select %p173, %s19, 0
      %p175 = scmp.lt.s32.totalorder %s170, 1
      %s176 = scalar_select %p175, %s170, 1
      %s177 = smul.addr %s174, 2
      %s178 = sadd.s32 %s176, %s177
      %s179 = smul.addr %s172, 2
      %s180 = sadd.s32 %s178, %s179
      %s181 = smul.addr %s180, 4
      %s182 = scalar_lea.vmem %s0, %s181
      %p183 = pneg %p57
      %p184 = pneg %p54
      %s185 = smul.u32 2, %s20
      %p186 = scmp.lt.s32.totalorder %s18, 1
      %s187 = scalar_select %p186, %s18, 1
      %p188 = scmp.lt.s32.totalorder %s185, 1
      %s189 = scalar_select %p188, %s185, 1
      %s190 = smul.addr %s187, 2
      %s191 = sadd.s32 %s189, %s190
      %s192 = scalar_lea.vmem %s1, %s191
      %p193 = pneg %p85
      %p194 = pneg %p82
      %p195 = pneg %p115
      %p196 = pneg %p112
      %s197 = smul.u32 2, %s20
      %p198 = scmp.lt.s32.totalorder %s18, 1
      %s199 = scalar_select %p198, %s18, 1
      %p200 = scmp.lt.s32.totalorder %s19, 0
      %s201 = scalar_select %p200, %s19, 0
      %p202 = scmp.lt.s32.totalorder %s197, 1
      %s203 = scalar_select %p202, %s197, 1
      %s204 = smul.addr %s201, 2
      %s205 = sadd.s32 %s203, %s204
      %s206 = smul.addr %s199, 2
      %s207 = sadd.s32 %s205, %s206
      %s208 = smul.addr %s207, 4
      %s209 = scalar_lea.vmem %s2, %s208
      %s210 = smul.u32 2, %s20
      %p211 = scmp.lt.s32.totalorder %s18, 1
      %s212 = scalar_select %p211, %s18, 1
      %p213 = scmp.lt.s32.totalorder %s19, 0
      %s214 = scalar_select %p213, %s19, 0
      %p215 = scmp.lt.s32.totalorder %s210, 1
      %s216 = scalar_select %p215, %s210, 1
      %s217 = smul.addr %s214, 2
      %s218 = sadd.s32 %s216, %s217
      %s219 = smul.addr %s212, 2
      %s220 = sadd.s32 %s218, %s219
      %s221 = smul.addr %s220, 4
      %s222 = scalar_lea.vmem %s0, %s221
      %s223 = smul.u32 2, %s20
      %s224 = smul.u32 2, %s20
      %p225 = scmp.lt.s32.totalorder %s18, 1
      %s226 = scalar_select %p225, %s18, 1
      %p227 = scmp.lt.s32.totalorder %s224, 1
      %s228 = scalar_select %p227, %s224, 1
      %s229 = smul.addr %s226, 2
      %s230 = sadd.s32 %s228, %s229
      %s231 = scalar_lea.vmem %s1, %s230
      %s232 = smul.u32 2, %s20
      %s233 = smul.u32 2, %s20
      %p234 = scmp.lt.s32.totalorder %s18, 1
      %s235 = scalar_select %p234, %s18, 1
      %p236 = scmp.lt.s32.totalorder %s19, 0
      %s237 = scalar_select %p236, %s19, 0
      %p238 = scmp.lt.s32.totalorder %s233, 1
      %s239 = scalar_select %p238, %s233, 1
      %s240 = smul.addr %s237, 2
      %s241 = sadd.s32 %s239, %s240
      %s242 = smul.addr %s235, 2
      %s243 = sadd.s32 %s241, %s242
      %s244 = smul.addr %s243, 4
      %s245 = scalar_lea.vmem %s2, %s244
      %s246 = smul.u32 2, %s20
      %v247 = vld [vmem:[%s222] sm:$0xff]
      %v248 = vld [vmem:[%s231] sm:$0x3]
      %v250 = vlaneseq
      %v251 = vshrl.u32 %v250, 7
      %v252 = vsub.s32 0, %v251
      %v253 = vrot.slane %v248, %v252
      %v254 = vlaneseq
      %v255 = vshrl.u32 %v254, 7
      %v256 = vsub.s32 1, %v255
      %v257 = vrot.slane %v248, %v256
      %v258 = vcombine.low %v253, %v257
      %v260 = vmul.f32 %v247, %v258
      %261 = vst [vmem:[%s245] sm:$0xff] %v260
      %s262 = smul.u32 2, %s20
      %p263 = scmp.lt.s32.totalorder %s18, 1
      %s264 = scalar_select %p263, %s18, 1
      %p265 = scmp.lt.s32.totalorder %s19, 0
      %s266 = scalar_select %p265, %s19, 0
      %p267 = scmp.lt.s32.totalorder %s262, 1
      %s268 = scalar_select %p267, %s262, 1
      %s269 = smul.addr %s266, 2
      %s270 = sadd.s32 %s268, %s269
      %s271 = smul.addr %s264, 2
      %s272 = sadd.s32 %s270, %s271
      %s273 = smul.addr %s272, 4
      %s274 = scalar_lea.vmem %s2, %s273
      // Predicated region
      $region29: #{spatial_attention.3} parent=27 // pred_check
        %p275 = pneg %p112
      $region30: #{spatial_attention.3} parent=27 // pred_check_branch
        %277 = sbr.rel (%p275) target = $region32
      $region31: #{spatial_attention.3} parent=27 // pred_region
        %s278 = smul.u32 2, %s20
      $region32: #{spatial_attention.3} parent=27 // pred_fallthru
        _
    $region28: #{spatial_attention.3} parent=5 // pred_fallthru
      _
    %p279 = scmp.le.s32.totalorder 2, %s8
    // Predicated region
    $region33: #{spatial_attention.3} parent=5 // pred_check
      %p280 = pneg %p279
    $region34: #{spatial_attention.3} parent=5 // pred_check_branch
      %282 = sbr.rel (%p280) target = $region36
    $region35: #{spatial_attention.3} parent=5 // pred_region
      %s283 = ssub.s32 %s8, 2
      // Predicated region
      $region37: #{spatial_attention.3} parent=35 // pred_check
        %p284 = pneg %p118
      $region38: #{spatial_attention.3} parent=35 // pred_check_branch
        %286 = sbr.rel (%p284) target = $region40
      $region39: #{spatial_attention.3} parent=35 // pred_region
        %s287 = smul.u32 2, %s23
        %p288 = scmp.lt.s32.totalorder %s21, 1
        %s289 = scalar_select %p288, %s21, 1
        %p290 = scmp.lt.s32.totalorder %s22, 0
        %s291 = scalar_select %p290, %s22, 0
        %p292 = scmp.lt.s32.totalorder %s287, 1
        %s293 = scalar_select %p292, %s287, 1
        %s294 = smul.addr %s291, 2
        %s295 = sadd.s32 %s293, %s294
        %s296 = smul.addr %s289, 2
        %s297 = sadd.s32 %s295, %s296
        %s298 = smul.addr %s297, 4
        %s299 = scalar_lea.vmem %s2, %s298
      $region40: #{spatial_attention.3} parent=35 // pred_fallthru
        _
    $region36: #{spatial_attention.3} parent=5 // pred_fallthru
      _
  $region6: #{spatial_attention.3} parent=0 // loop_footer
    %s12 = sadd.s32 1, %s8
  $region7: #{spatial_attention.3} parent=0 // loop_footer_branch
    %7 = sbr.rel target = $region3
  $region8: #{spatial_attention.3} parent=0 // loop_exit
    _

// kernel: spatial_attention.2
$region0: #{spatial_attention.2}
  #allocation0 [shape = 'u32[]', space=smem, size = 0x4, offset = 0x4, fixed_abs, tag = 'smem constant byte address 0x4 - core index']
  #allocation1 [shape = 'u32[144,128]{1,0:T(1,128)}', space=vmem, size = 0x12000, scoped, tag = 'internal scratch']
  #allocation2 [shape = 'f32[2,16,16]{2,1,0:T(8,128)}', space=vmem, size = 0x4000, scoped, tag = 'scratch operand']
  #allocation3 [shape = 'f32[2,22,22]{2,1,0:T(8,128)}', space=vmem, size = 0x6000, scoped, tag = 'scratch operand']
  #allocation4 [shape = 'f32[22,16]{1,0:T(8,128)}', space=vmem, size = 0x3000, scoped, tag = 'scratch operand']
  %s0 = inlined_call_operand.vmem [shape: f32[2,4,16,16], index: 0, kind: input, shape index: {}]
  %s1 = inlined_call_operand.vmem [shape: f32[98], index: 1, kind: input, shape index: {}]
  %s2 = inlined_call_operand.vmem [shape: f32[2,16,16], index: 2, kind: output, shape index: {}]
  %s3 = sld [smem:[#allocation0]]
  $region57: #{spatial_attention.2} parent=0
    _
  %s5 = ssub.s32 1, %s3
  %s6 = scalar_select 0, %s5, %s3
  $region1: #{spatial_attention.2} parent=0
    #allocation5 [shape = 'u8[512]{0}', space=smem, size = 0x200, scoped, tag = 'input window, operand 1, single buffered']
    #allocation6 [shape = 's32[2]{0}', space=sflag, size = 0x8, scoped, tag = 'scoped memory for spatial_attention.2']
    %7 = vsyncpa [#allocation6], 0
    loop: start=0, step=1, limit=4
    $region2: #{spatial_attention.2} parent=1 // loop_pre_header
      _
    $region3: #{spatial_attention.2} parent=1 // loop_header
      %s9 = sphi 0, %s13
      %p10 = scmp.ge.s32.totalorder %s9, 4
      %s16 = sphi 0, %s28
      %s17 = sphi 0, %s24
      %s18 = sphi 0, %s16
      %s19 = sphi 0, %s17
      %s20 = sphi 0, %s18
      %s21 = sphi 0, %s19
      %s33 = sphi 0, %s35
      %s36 = sphi 0, %s33
      %s37 = sphi 0, %s36
      %s53 = sphi 0, %s37
      %s57 = sphi 0, %s57
      %s59 = sphi 0, %s57
      %s60 = sphi 0, %s59
      %s74 = sphi 0, %s60
      %s80 = sphi 0, %s82
      %s83 = sphi 0, %s80
      %s84 = sphi 0, %s83
      %s100 = sphi 0, %s84
    $region4: #{spatial_attention.2} parent=1 // loop_header_branch
      %12 = sbr.rel (%p10) target = $region8
    $region5: #{spatial_attention.2} parent=1 // loop_body
      %s14 = ssub.s32 %s9, 1
      %s15 = ssub.s32 %s9, 2
      %s22 = sadd.s32 1, %s17
      %p23 = scmp.ge.s32.totalorder %s22, 1
      %s24 = scalar_select %p23, 0, %s22
      %s25 = sadd.s32 1, %s16
      %s26 = scalar_select %p23, %s25, %s16
      %p27 = scmp.ge.s32.totalorder %s26, 2
      %s28 = scalar_select %p27, 0, %s26
      %s29 = ssub.s32 %s16, %s28
      %s30 = ssub.s32 %s17, %s24
      %s31 = sor.u32 %s29, %s30
      %p32 = scmp.eq.s32.totalorder %s31, 0
      %s34 = sadd.s32 %s33, 1
      %s35 = scalar_select %p32, %s33, %s34
      %p38 = pneg %p32
      %p39 = scmp.eq.s32.totalorder %s9, 1
      %p40 = por %p38, %p39
      %p41 = scmp.ne.s32.totalorder %s33, %s36
      %p42 = scmp.eq.s32.totalorder %s9, 0
      %p43 = por %p41, %p42
      %p44 = scmp.ne.s32.totalorder %s33, %s36
      %p45 = scmp.eq.s32.totalorder %s14, 1
      %p46 = por %p44, %p45
      %p47 = scmp.ne.s32.totalorder %s36, %s37
      %p48 = scmp.eq.s32.totalorder %s14, 0
      %p49 = por %p47, %p48
      %p50 = scmp.ne.s32.totalorder %s36, %s37
      %p51 = scmp.eq.s32.totalorder %s15, 1
      %p52 = por %p50, %p51
      %p54 = scmp.ne.s32.totalorder %s37, %s53
      %p55 = scmp.eq.s32.totalorder %s15, 0
      %p56 = por %p54, %p55
      %s58 = sadd.s32 %s57, 1
      %p61 = scmp.eq.s32.totalorder %s9, 1
      %p62 = scmp.ne.s32.totalorder %s57, %s59
      %p63 = scmp.eq.s32.totalorder %s9, 0
      %p64 = por %p62, %p63
      %p65 = scmp.ne.s32.totalorder %s57, %s59
      %p66 = scmp.eq.s32.totalorder %s14, 1
      %p67 = por %p65, %p66
      %p68 = scmp.ne.s32.totalorder %s59, %s60
      %p69 = scmp.eq.s32.totalorder %s14, 0
      %p70 = por %p68, %p69
      %p71 = scmp.ne.s32.totalorder %s59, %s60
      %p72 = scmp.eq.s32.totalorder %s15, 1
      %p73 = por %p71, %p72
      %p75 = scmp.ne.s32.totalorder %s60, %s74
      %p76 = scmp.eq.s32.totalorder %s15, 0
      %p77 = por %p75, %p76
      %s78 = ssub.s32 %s16, %s28
      %p79 = scmp.eq.s32.totalorder %s78, 0
      %s81 = sadd.s32 %s80, 1
      %s82 = scalar_select %p79, %s80, %s81
      %p85 = pneg %p79
      %p86 = scmp.eq.s32.totalorder %s9, 1
      %p87 = por %p85, %p86
      %p88 = scmp.ne.s32.totalorder %s80, %s83
      %p89 = scmp.eq.s32.totalorder %s9, 0
      %p90 = por %p88, %p89
      %p91 = scmp.ne.s32.totalorder %s80, %s83
      %p92 = scmp.eq.s32.totalorder %s14, 1
      %p93 = por %p91, %p92
      %p94 = scmp.ne.s32.totalorder %s83, %s84
      %p95 = scmp.eq.s32.totalorder %s14, 0
      %p96 = por %p94, %p95
      %p97 = scmp.ne.s32.totalorder %s83, %s84
      %p98 = scmp.eq.s32.totalorder %s15, 1
      %p99 = por %p97, %p98
      %p101 = scmp.ne.s32.totalorder %s84, %s100
      %p102 = scmp.eq.s32.totalorder %s15, 0
      %p103 = por %p101, %p102
      %p104 = scmp.le.s32.totalorder 1, %s9
      %p105 = scmp.lt.s32.totalorder %s9, 3
      %p106 = pnand %p104, %p105
      %p107 = pneg %p106
      // Predicated region
      $region9: #{spatial_attention.2} parent=5 // pred_check
        _
      $region10: #{spatial_attention.2} parent=5 // pred_check_branch
        %109 = sbr.rel (%p106) target = $region12
      $region11: #{spatial_attention.2} parent=5 // pred_region
        %s110 = ssub.s32 %s9, 1
        // Predicated region
        $region13: #{spatial_attention.2} parent=11 // pred_check
          %p111 = pneg %p70
        $region14: #{spatial_attention.2} parent=11 // pred_check_branch
          %113 = sbr.rel (%p111) target = $region16
        $region15: #{spatial_attention.2} parent=11 // pred_region
          %s115 = ssub.s32 16, 16
          %116 = vsyncadd [#allocation6], %s115
          %s118 = sshll.u32 %s1, 4
          %s119 = int_to_ptr.vmem [resolvable:$true] %s118
          %121 = dma.vmem_to_smem %s119, 16, [#allocation5], [#allocation6]
        $region16: #{spatial_attention.2} parent=11 // pred_fallthru
          _
      $region12: #{spatial_attention.2} parent=5 // pred_fallthru
        _
      %p122 = scmp.lt.s32.totalorder %s9, 2
      // Predicated region
      $region17: #{spatial_attention.2} parent=5 // pred_check
        %p123 = pneg %p122
      $region18: #{spatial_attention.2} parent=5 // pred_check_branch
        %125 = sbr.rel (%p123) target = $region20
      $region19: #{spatial_attention.2} parent=5 // pred_region
        // Predicated region
        $region21: #{spatial_attention.2} parent=19 // pred_check
          %p126 = pneg %p43
        $region22: #{spatial_attention.2} parent=19 // pred_check_branch
          %128 = sbr.rel (%p126) target = $region24
        $region23: #{spatial_attention.2} parent=19 // pred_region
          %s129 = smul.u32 4, %s17
          %p130 = scmp.lt.s32.totalorder %s16, 1
          %s131 = scalar_select %p130, %s16, 1
          %p132 = scmp.lt.s32.totalorder %s129, 3
          %s133 = scalar_select %p132, %s129, 3
          %s134 = smul.addr %s133, 2
          %s135 = smul.addr %s131, 8
          %s136 = sadd.s32 %s134, %s135
          %s137 = smul.addr %s136, 8
          %s138 = scalar_lea.vmem %s0, %s137
          %s139 = smul.u32 4, %s17
        $region24: #{spatial_attention.2} parent=19 // pred_fallthru
          _
      $region20: #{spatial_attention.2} parent=5 // pred_fallthru
        _
      %p140 = scmp.le.s32.totalorder 1, %s9
      %p141 = scmp.lt.s32.totalorder %s9, 3
      %p142 = pnand %p140, %p141
      %p143 = pneg %p142
      // Predicated region
      $region25: #{spatial_attention.2} parent=5 // pred_check
        _
      $region26: #{spatial_attention.2} parent=5 // pred_check_branch
        %145 = sbr.rel (%p142) target = $region28
      $region27: #{spatial_attention.2} parent=5 // pred_region
        %s146 = ssub.s32 %s9, 1
        // Predicated region
        $region29: #{spatial_attention.2} parent=27 // pred_check
          %p147 = pneg %p70
        $region30: #{spatial_attention.2} parent=27 // pred_check_branch
          %149 = sbr.rel (%p147) target = $region32
        $region31: #{spatial_attention.2} parent=27 // pred_region
          %150 = dma.done [#allocation6], 16
        $region32: #{spatial_attention.2} parent=27 // pred_fallthru
          _
        %151 = sfence
        %s152 = smul.u32 4, %s19
        %p153 = scmp.lt.s32.totalorder %s18, 1
        %s154 = scalar_select %p153, %s18, 1
        %p155 = scmp.lt.s32.totalorder %s152, 3
        %s156 = scalar_select %p155, %s152, 3
        %s157 = smul.addr %s156, 2
        %s158 = smul.addr %s154, 8
        %s159 = sadd.s32 %s157, %s158
        %s160 = smul.addr %s159, 8
        %s161 = scalar_lea.vmem %s0, %s160
        %p162 = pneg %p49
        %p163 = pneg %p46
        %p164 = pneg %p70
        %p165 = pneg %p67
        %p166 = pneg %p96
        %p167 = pneg %p93
        %p168 = scmp.lt.s32.totalorder %s18, 1
        %s169 = scalar_select %p168, %s18, 1
        %s170 = smul.addr %s169, 2
        %s171 = smul.addr %s170, 8
        %s172 = scalar_lea.vmem %s2, %s171
        %s173 = smul.u32 4, %s19
        %p174 = scmp.lt.s32.totalorder %s18, 1
        %s175 = scalar_select %p174, %s18, 1
        %p176 = scmp.lt.s32.totalorder %s173, 3
        %s177 = scalar_select %p176, %s173, 3
        %s178 = smul.addr %s177, 2
        %s179 = smul.addr %s175, 8
        %s180 = sadd.s32 %s178, %s179
        %s181 = smul.addr %s180, 8
        %s182 = scalar_lea.vmem %s0, %s181
        %s183 = smul.u32 4, %s19
        %p184 = scmp.lt.s32.totalorder %s18, 1
        %s185 = scalar_select %p184, %s18, 1
        %s186 = smul.addr %s185, 2
        %s187 = smul.addr %s186, 8
        %s188 = scalar_lea.vmem %s2, %s187
        %p189 = scmp.eq.s32.totalorder %s18, 0
        %p190 = scmp.eq.s32.totalorder %s19, 0
        %p191 = pnand %p189, %p190
        %p192 = pneg %p191
        // Predicated region
        $region33: #{spatial_attention.2} parent=27 // pred_check
          _
        $region34: #{spatial_attention.2} parent=27 // pred_check_branch
          %194 = sbr.rel (%p191) target = $region36
        $region35: #{spatial_attention.2} parent=27 // pred_region
          %vm195 = vcmask 179200
          %196 = vst.msk [vmem:[#allocation3] sm:$0xff] %vm195, 0.0
          %197 = vst.msk [vmem:[#allocation3 + $0x8] sm:$0xff] %vm195, 0.0
          %vm198 = vcmask 177152
          %199 = vst.msk [vmem:[#allocation3 + $0x10] sm:$0x3f] %vm198, 0.0
          %200 = vst.msk [vmem:[#allocation3 + $0x18] sm:$0xff] %vm195, 0.0
          %201 = vst.msk [vmem:[#allocation3 + $0x20] sm:$0xff] %vm195, 0.0
          %202 = vst.msk [vmem:[#allocation3 + $0x28] sm:$0x3f] %vm198, 0.0
        $region36: #{spatial_attention.2} parent=27 // pred_fallthru
          _
        // Predicated region
        $region37: #{spatial_attention.2} parent=27 // pred_check
          %p203 = pneg %p190
        $region38: #{spatial_attention.2} parent=27 // pred_check_branch
          %205 = sbr.rel (%p203) target = $region40
        $region39: #{spatial_attention.2} parent=27 // pred_region
          %vm206 = vcmask 130048
          %207 = vst.msk [vmem:[#allocation2] sm:$0xff] %vm206, 0.0
          %208 = vst.msk [vmem:[#allocation2 + $0x8] sm:$0xff] %vm206, 0.0
          %s209 = scalar_lea.vmem [#allocation2], 16
          %210 = vst.msk [vmem:[%s209] sm:$0xff] %vm206, -inf
          %211 = vst.msk [vmem:[%s209 + $0x8] sm:$0xff] %vm206, -inf
        $region40: #{spatial_attention.2} parent=27 // pred_fallthru
          _
        %v212 = vld [vmem:[%s182] sm:$0xff]
        %v213 = vld [vmem:[%s182 + $0x8] sm:$0xff]
        %v214 = vld [vmem:[%s182 + $0x10] sm:$0xff]
        %v215 = vld [vmem:[%s182 + $0x18] sm:$0xff]
        %v216 = vld [vmem:[%s182 + $0x20] sm:$0xff]
        %v217 = vld [vmem:[%s182 + $0x28] sm:$0xff]
        %v218 = vld [vmem:[%s182 + $0x30] sm:$0xff]
        %v219 = vld [vmem:[%s182 + $0x38] sm:$0xff]
        %v220 = vld [vmem:[#allocation2] sm:$0xff]
        %v221 = vld [vmem:[#allocation2 + $0x8] sm:$0xff]
        %vm222 = vcmask 130048
        %v223 = vsel %vm222, %v212, 0.0
        %v224 = vsel %vm222, %v214, 0.0
        %v225 = vadd.f32 %v223, %v224
        %v226 = vsel %vm222, %v216, 0.0
        %v227 = vadd.f32 %v225, %v226
        %v228 = vsel %vm222, %v218, 0.0
        %v229 = vadd.f32 %v227, %v228
        %v230 = vsel %vm222, %v213, 0.0
        %v231 = vsel %vm222, %v215, 0.0
        %v232 = vadd.f32 %v230, %v231
        %v233 = vsel %vm222, %v217, 0.0
        %v234 = vadd.f32 %v232, %v233
        %v235 = vsel %vm222, %v219, 0.0
        %v236 = vadd.f32 %v234, %v235
        %v237 = vadd.f32 %v220, %v229
        %v238 = vadd.f32 %v221, %v236
        %239 = vst.msk [vmem:[#allocation2] sm:$0xff] %vm222, %v237
        %240 = vst.msk [vmem:[#allocation2 + $0x8] sm:$0xff] %vm222, %v238
        %s241 = scalar_lea.vmem [#allocation2], 16
        %v242 = vld [vmem:[%s241] sm:$0xff]
        %v243 = vld [vmem:[%s241 + $0x8] sm:$0xff]
        %v244 = vsel %vm222, %v212, -inf
        %v245 = vsel %vm222, %v214, -inf
        %v246 = vsel %vm222, %v216, -inf
        %v247 = vmax.f32 %v244, %v246
        %v248 = vsel %vm222, %v218, -inf
        %v249 = vmax.f32 %v245, %v248
        %v250 = vmax.f32 %v247, %v249
        %v251 = vsel %vm222, %v213, -inf
        %v252 = vsel %vm222, %v215, -inf
        %v253 = vsel %vm222, %v217, -inf
        %v254 = vmax.f32 %v251, %v253
        %v255 = vsel %vm222, %v219, -inf
        %v256 = vmax.f32 %v252, %v255
        %v257 = vmax.f32 %v254, %v256
        %v258 = vmax.f32 %v242, %v250
        %v259 = vmax.f32 %v243, %v257
        %260 = vst.msk [vmem:[%s241] sm:$0xff] %vm222, %v258
        %261 = vst.msk [vmem:[%s241 + $0x8] sm:$0xff] %vm222, %v259
        // Predicated region
        $region41: #{spatial_attention.2} parent=27 // pred_check
          %p262 = pneg %p190
        $region42: #{spatial_attention.2} parent=27 // pred_check_branch
          %264 = sbr.rel (%p262) target = $region44
        $region43: #{spatial_attention.2} parent=27 // pred_region
          %v265 = vld [vmem:[#allocation2] sm:$0xff]
          %v266 = vld [vmem:[#allocation2 + $0x8] sm:$0xff]
          %v267 = vmul.f32 %v265, 0.25
          %v268 = vmul.f32 %v266, 0.25
          %271 = vrot.lane.b32.xlu0 %v267, 3
          %v272 = vpop.permute.xlu0 %271
          %273 = vrot.lane.b32.xlu0 %v268, 3
          %v274 = vpop.permute.xlu0 %273
          %vm277 = vcmask 154648
          %278 = vst.msk [vmem:[#allocation3 + $0x3] sm:$0xff] %vm277, %v272
          %279 = vst.msk [vmem:[#allocation3 + $0xb] sm:$0xff] %vm277, %v274
          %v280 = vld [vmem:[%s241] sm:$0xff]
          %v281 = vld [vmem:[%s241 + $0x8] sm:$0xff]
          %284 = vrot.lane.b32.xlu0 %v280, 3
          %v285 = vpop.permute.xlu0 %284
          %286 = vrot.lane.b32.xlu0 %v281, 3
          %v287 = vpop.permute.xlu0 %286
          %s290 = scalar_lea.vmem [#allocation3], 24
          %291 = vst.msk [vmem:[%s290 + $0x3] sm:$0xff] %vm277, %v285
          %292 = vst.msk [vmem:[%s290 + $0xb] sm:$0xff] %vm277, %v287
          %v293 = vld [vmem:[#allocation3] sm:$0xff]
          %v294 = vld [vmem:[#allocation3 + $0x8] sm:$0xff]
          %v295 = vld [vmem:[#allocation3 + $0x10] sm:$0x3f]
          %296 = vst.msk [vmem:[#allocation4] sm:$0xff] %vm222, %v293
          %297 = vst.msk [vmem:[#allocation4 + $0x8] sm:$0xff] %vm222, %v294
          %vm298 = vcmask 128000
          %299 = vst.msk [vmem:[#allocation4 + $0x10] sm:$0x3f] %vm298, %v295
          %s300 = sld [smem:[#allocation5]]
          %v301 = vld [vmem:[#allocation4] sm:$0xff]
          %v302 = vld [vmem:[#allocation4 + $0x8] sm:$0xff]
          %v303 = vstv %s300
          %v304 = vmul.f32 %v303, %v301
          %v305 = vmul.f32 %v303, %v302
          %v306 = vadd.f32 %v304, 0.0
          %v307 = vadd.f32 %v305, 0.0
          %s308 = sld [smem:[#allocation5 + $0x7]]
          %v309 = vld [vmem:[#allocation4 + $0x1] sm:$0xff]
          %v310 = vld [vmem:[#allocation4 + $0x9] sm:$0xff]
          %v311 = vstv %s308
          %v312 = vmul.f32 %v311, %v309
          %v313 = vmul.f32 %v311, %v310
          %v314 = vadd.f32 %v306, %v312
          %v315 = vadd.f32 %v307, %v313
          %s316 = sld [smem:[#allocation5 + $0xe]]
          %v317 = vld [vmem:[#allocation4 + $0x2] sm:$0xff]
          %v318 = vld [vmem:[#allocation4 + $0xa] sm:$0xff]
          %v319 = vstv %s316
          %v320 = vmul.f32 %v319, %v317
          %v321 = vmul.f32 %v319, %v318
          %v322 = vadd.f32 %v314, %v320
          %v323 = vadd.f32 %v315, %v321
          %s324 = sld [smem:[#allocation5 + $0x15]]
          %v325 = vld [vmem:[#allocation4 + $0x3] sm:$0xff]
          %v326 = vld [vmem:[#allocation4 + $0xb] sm:$0xff]
          %v327 = vstv %s324
          %v328 = vmul.f32 %v327, %v325
          %v329 = vmul.f32 %v327, %v326
          %v330 = vadd.f32 %v322, %v328
          %v331 = vadd.f32 %v323, %v329
          %s332 = sld [smem:[#allocation5 + $0x1c]]
          %v333 = vld [vmem:[#allocation4 + $0x4] sm:$0xff]
          %v334 = vld [vmem:[#allocation4 + $0xc] sm:$0xff]
          %v335 = vstv %s332
          %v336 = vmul.f32 %v335, %v333
          %v337 = vmul.f32 %v335, %v334
          %v338 = vadd.f32 %v330, %v336
          %v339 = vadd.f32 %v331, %v337
          %s340 = sld [smem:[#allocation5 + $0x23]]
          %v341 = vld [vmem:[#allocation4 + $0x5] sm:$0xff]
          %v342 = vld [vmem:[#allocation4 + $0xd] sm:$0xff]
          %v343 = vstv %s340
          %v344 = vmul.f32 %v343, %v341
          %v345 = vmul.f32 %v343, %v342
          %v346 = vadd.f32 %v338, %v344
          %v347 = vadd.f32 %v339, %v345
          %s348 = sld [smem:[#allocation5 + $0x2a]]
          %v349 = vld [vmem:[#allocation4 + $0x6] sm:$0xff]
          %v350 = vld [vmem:[#allocation4 + $0xe] sm:$0xff]
          %v351 = vstv %s348
          %v352 = vmul.f32 %v351, %v349
          %v353 = vmul.f32 %v351, %v350
          %v354 = vadd.f32 %v346, %v352
          %v355 = vadd.f32 %v347, %v353
          %359 = vrot.lane.b32.xlu0 %v293, 127
          %v360 = vpop.permute.xlu0 %359
          %361 = vrot.lane.b32.xlu0 %v294, 127
          %v362 = vpop.permute.xlu0 %361
          %363 = vrot.lane.b32.xlu0 %v295, 127
          %v364 = vpop.permute.xlu0 %363
          %368 = vst.msk [vmem:[#allocation4] sm:$0xff] %vm222, %v360
          %369 = vst.msk [vmem:[#allocation4 + $0x8] sm:$0xff] %vm222, %v362
          %370 = vst.msk [vmem:[#allocation4 + $0x10] sm:$0x3f] %vm298, %v364
          %s371 = sld [smem:[#allocation5 + $0x1]]
          %v372 = vld [vmem:[#allocation4] sm:$0xff]
          %v373 = vld [vmem:[#allocation4 + $0x8] sm:$0xff]
          %v374 = vstv %s371
          %v375 = vmul.f32 %v374, %v372
          %v376 = vmul.f32 %v374, %v373
          %v377 = vadd.f32 %v354, %v375
          %v378 = vadd.f32 %v355, %v376
          %s379 = sld [smem:[#allocation5 + $0x8]]
          %v380 = vld [vmem:[#allocation4 + $0x1] sm:$0xff]
          %v381 = vld [vmem:[#allocation4 + $0x9] sm:$0xff]
          %v382 = vstv %s379
          %v383 = vmul.f32 %v382, %v380
          %v384 = vmul.f32 %v382, %v381
          %v385 = vadd.f32 %v377, %v383
          %v386 = vadd.f32 %v378, %v384
          %s387 = sld [smem:[#allocation5 + $0xf]]
          %v388 = vld [vmem:[#allocation4 + $0x2] sm:$0xff]
          %v389 = vld [vmem:[#allocation4 + $0xa] sm:$0xff]
          %v390 = vstv %s387
          %v391 = vmul.f32 %v390, %v388
          %v392 = vmul.f32 %v390, %v389
          %v393 = vadd.f32 %v385, %v391
          %v394 = vadd.f32 %v386, %v392
          %s395 = sld [smem:[#allocation5 + $0x16]]
          %v396 = vld [vmem:[#allocation4 + $0x3] sm:$0xff]
          %v397 = vld [vmem:[#allocation4 + $0xb] sm:$0xff]
          %v398 = vstv %s395
          %v399 = vmul.f32 %v398, %v396
          %v400 = vmul.f32 %v398, %v397
          %v401 = vadd.f32 %v393, %v399
          %v402 = vadd.f32 %v394, %v400
          %s403 = sld [smem:[#allocation5 + $0x1d]]
          %v404 = vld [vmem:[#allocation4 + $0x4] sm:$0xff]
          %v405 = vld [vmem:[#allocation4 + $0xc] sm:$0xff]
          %v406 = vstv %s403
          %v407 = vmul.f32 %v406, %v404
          %v408 = vmul.f32 %v406, %v405
          %v409 = vadd.f32 %v401, %v407
          %v410 = vadd.f32 %v402, %v408
          %s411 = sld [smem:[#allocation5 + $0x24]]
          %v412 = vld [vmem:[#allocation4 + $0x5] sm:$0xff]
          %v413 = vld [vmem:[#allocation4 + $0xd] sm:$0xff]
          %v414 = vstv %s411
          %v415 = vmul.f32 %v414, %v412
          %v416 = vmul.f32 %v414, %v413
          %v417 = vadd.f32 %v409, %v415
          %v418 = vadd.f32 %v410, %v416
          %s419 = sld [smem:[#allocation5 + $0x2b]]
          %v420 = vld [vmem:[#allocation4 + $0x6] sm:$0xff]
          %v421 = vld [vmem:[#allocation4 + $0xe] sm:$0xff]
          %v422 = vstv %s419
          %v423 = vmul.f32 %v422, %v420
          %v424 = vmul.f32 %v422, %v421
          %v425 = vadd.f32 %v417, %v423
          %v426 = vadd.f32 %v418, %v424
          %427 = vrot.lane.b32.xlu0 %v293, 126
          %v428 = vpop.permute.xlu0 %427
          %429 = vrot.lane.b32.xlu0 %v294, 126
          %v430 = vpop.permute.xlu0 %429
          %431 = vrot.lane.b32.xlu0 %v295, 126
          %v432 = vpop.permute.xlu0 %431
          %436 = vst.msk [vmem:[#allocation4] sm:$0xff] %vm222, %v428
          %437 = vst.msk [vmem:[#allocation4 + $0x8] sm:$0xff] %vm222, %v430
          %438 = vst.msk [vmem:[#allocation4 + $0x10] sm:$0x3f] %vm298, %v432
          %s439 = sld [smem:[#allocation5 + $0x2]]
          %v440 = vld [vmem:[#allocation4] sm:$0xff]
          %v441 = vld [vmem:[#allocation4 + $0x8] sm:$0xff]
          %v442 = vstv %s439
          %v443 = vmul.f32 %v442, %v440
          %v444 = vmul.f32 %v442, %v441
          %v445 = vadd.f32 %v425, %v443
          %v446 = vadd.f32 %v426, %v444
          %s447 = sld [smem:[#allocation5 + $0x9]]
          %v448 = vld [vmem:[#allocation4 + $0x1] sm:$0xff]
          %v449 = vld [vmem:[#allocation4 + $0x9] sm:$0xff]
          %v450 = vstv %s447
          %v451 = vmul.f32 %v450, %v448
          %v452 = vmul.f32 %v450, %v449
          %v453 = vadd.f32 %v445, %v451
          %v454 = vadd.f32 %v446, %v452
          %s455 = sld [smem:[#allocation5 + $0x10]]
          %v456 = vld [vmem:[#allocation4 + $0x2] sm:$0xff]
          %v457 = vld [vmem:[#allocation4 + $0xa] sm:$0xff]
          %v458 = vstv %s455
          %v459 = vmul.f32 %v458, %v456
          %v460 = vmul.f32 %v458, %v457
          %v461 = vadd.f32 %v453, %v459
          %v462 = vadd.f32 %v454, %v460
          %s463 = sld [smem:[#allocation5 + $0x17]]
          %v464 = vld [vmem:[#allocation4 + $0x3] sm:$0xff]
          %v465 = vld [vmem:[#allocation4 + $0xb] sm:$0xff]
          %v466 = vstv %s463
          %v467 = vmul.f32 %v466, %v464
          %v468 = vmul.f32 %v466, %v465
          %v469 = vadd.f32 %v461, %v467
          %v470 = vadd.f32 %v462, %v468
          %s471 = sld [smem:[#allocation5 + $0x1e]]
          %v472 = vld [vmem:[#allocation4 + $0x4] sm:$0xff]
          %v473 = vld [vmem:[#allocation4 + $0xc] sm:$0xff]
          %v474 = vstv %s471
          %v475 = vmul.f32 %v474, %v472
          %v476 = vmul.f32 %v474, %v473
          %v477 = vadd.f32 %v469, %v475
          %v478 = vadd.f32 %v470, %v476
          %s479 = sld [smem:[#allocation5 + $0x25]]
          %v480 = vld [vmem:[#allocation4 + $0x5] sm:$0xff]
          %v481 = vld [vmem:[#allocation4 + $0xd] sm:$0xff]
          %v482 = vstv %s479
          %v483 = vmul.f32 %v482, %v480
          %v484 = vmul.f32 %v482, %v481
          %v485 = vadd.f32 %v477, %v483
          %v486 = vadd.f32 %v478, %v484
          %s487 = sld [smem:[#allocation5 + $0x2c]]
          %v488 = vld [vmem:[#allocation4 + $0x6] sm:$0xff]
          %v489 = vld [vmem:[#allocation4 + $0xe] sm:$0xff]
          %v490 = vstv %s487
          %v491 = vmul.f32 %v490, %v488
          %v492 = vmul.f32 %v490, %v489
          %v493 = vadd.f32 %v485, %v491
          %v494 = vadd.f32 %v486, %v492
          %495 = vrot.lane.b32.xlu0 %v293, 125
          %v496 = vpop.permute.xlu0 %495
          %497 = vrot.lane.b32.xlu0 %v294, 125
          %v498 = vpop.permute.xlu0 %497
          %499 = vrot.lane.b32.xlu0 %v295, 125
          %v500 = vpop.permute.xlu0 %499
          %504 = vst.msk [vmem:[#allocation4] sm:$0xff] %vm222, %v496
          %505 = vst.msk [vmem:[#allocation4 + $0x8] sm:$0xff] %vm222, %v498
          %506 = vst.msk [vmem:[#allocation4 + $0x10] sm:$0x3f] %vm298, %v500
          %s507 = sld [smem:[#allocation5 + $0x3]]
          %v508 = vld [vmem:[#allocation4] sm:$0xff]
          %v509 = vld [vmem:[#allocation4 + $0x8] sm:$0xff]
          %v510 = vstv %s507
          %v511 = vmul.f32 %v510, %v508
          %v512 = vmul.f32 %v510, %v509
          %v513 = vadd.f32 %v493, %v511
          %v514 = vadd.f32 %v494, %v512
          %s515 = sld [smem:[#allocation5 + $0xa]]
          %v516 = vld [vmem:[#allocation4 + $0x1] sm:$0xff]
          %v517 = vld [vmem:[#allocation4 + $0x9] sm:$0xff]
          %v518 = vstv %s515
          %v519 = vmul.f32 %v518, %v516
          %v520 = vmul.f32 %v518, %v517
          %v521 = vadd.f32 %v513, %v519
          %v522 = vadd.f32 %v514, %v520
          %s523 = sld [smem:[#allocation5 + $0x11]]
          %v524 = vld [vmem:[#allocation4 + $0x2] sm:$0xff]
          %v525 = vld [vmem:[#allocation4 + $0xa] sm:$0xff]
          %v526 = vstv %s523
          %v527 = vmul.f32 %v526, %v524
          %v528 = vmul.f32 %v526, %v525
          %v529 = vadd.f32 %v521, %v527
          %v530 = vadd.f32 %v522, %v528
          %s531 = sld [smem:[#allocation5 + $0x18]]
          %v532 = vld [vmem:[#allocation4 + $0x3] sm:$0xff]
          %v533 = vld [vmem:[#allocation4 + $0xb] sm:$0xff]
          %v534 = vstv %s531
          %v535 = vmul.f32 %v534, %v532
          %v536 = vmul.f32 %v534, %v533
          %v537 = vadd.f32 %v529, %v535
          %v538 = vadd.f32 %v530, %v536
          %s539 = sld [smem:[#allocation5 + $0x1f]]
          %v540 = vld [vmem:[#allocation4 + $0x4] sm:$0xff]
          %v541 = vld [vmem:[#allocation4 + $0xc] sm:$0xff]
          %v542 = vstv %s539
          %v543 = vmul.f32 %v542, %v540
          %v544 = vmul.f32 %v542, %v541
          %v545 = vadd.f32 %v537, %v543
          %v546 = vadd.f32 %v538, %v544
          %s547 = sld [smem:[#allocation5 + $0x26]]
          %v548 = vld [vmem:[#allocation4 + $0x5] sm:$0xff]
          %v549 = vld [vmem:[#allocation4 + $0xd] sm:$0xff]
          %v550 = vstv %s547
          %v551 = vmul.f32 %v550, %v548
          %v552 = vmul.f32 %v550, %v549
          %v553 = vadd.f32 %v545, %v551
          %v554 = vadd.f32 %v546, %v552
          %s555 = sld [smem:[#allocation5 + $0x2d]]
          %v556 = vld [vmem:[#allocation4 + $0x6] sm:$0xff]
          %v557 = vld [vmem:[#allocation4 + $0xe] sm:$0xff]
          %v558 = vstv %s555
          %v559 = vmul.f32 %v558, %v556
          %v560 = vmul.f32 %v558, %v557
          %v561 = vadd.f32 %v553, %v559
          %v562 = vadd.f32 %v554, %v560
          %563 = vrot.lane.b32.xlu0 %v293, 124
          %v564 = vpop.permute.xlu0 %563
          %565 = vrot.lane.b32.xlu0 %v294, 124
          %v566 = vpop.permute.xlu0 %565
          %567 = vrot.lane.b32.xlu0 %v295, 124
          %v568 = vpop.permute.xlu0 %567
          %572 = vst.msk [vmem:[#allocation4] sm:$0xff] %vm222, %v564
          %573 = vst.msk [vmem:[#allocation4 + $0x8] sm:$0xff] %vm222, %v566
          %574 = vst.msk [vmem:[#allocation4 + $0x10] sm:$0x3f] %vm298, %v568
          %s575 = sld [smem:[#allocation5 + $0x4]]
          %v576 = vld [vmem:[#allocation4] sm:$0xff]
          %v577 = vld [vmem:[#allocation4 + $0x8] sm:$0xff]
          %v578 = vstv %s575
          %v579 = vmul.f32 %v578, %v576
          %v580 = vmul.f32 %v578, %v577
          %v581 = vadd.f32 %v561, %v579
          %v582 = vadd.f32 %v562, %v580
          %s583 = sld [smem:[#allocation5 + $0xb]]
          %v584 = vld [vmem:[#allocation4 + $0x1] sm:$0xff]
          %v585 = vld [vmem:[#allocation4 + $0x9] sm:$0xff]
          %v586 = vstv %s583
          %v587 = vmul.f32 %v586, %v584
          %v588 = vmul.f32 %v586, %v585
          %v589 = vadd.f32 %v581, %v587
          %v590 = vadd.f32 %v582, %v588
          %s591 = sld [smem:[#allocation5 + $0x12]]
          %v592 = vld [vmem:[#allocation4 + $0x2] sm:$0xff]
          %v593 = vld [vmem:[#allocation4 + $0xa] sm:$0xff]
          %v594 = vstv %s591
          %v595 = vmul.f32 %v594, %v592
          %v596 = vmul.f32 %v594, %v593
          %v597 = vadd.f32 %v589, %v595
          %v598 = vadd.f32 %v590, %v596
          %s599 = sld [smem:[#allocation5 + $0x19]]
          %v600 = vld [vmem:[#allocation4 + $0x3] sm:$0xff]
          %v601 = vld [vmem:[#allocation4 + $0xb] sm:$0xff]
          %v602 = vstv %s599
          %v603 = vmul.f32 %v602, %v600
          %v604 = vmul.f32 %v602, %v601
          %v605 = vadd.f32 %v597, %v603
          %v606 = vadd.f32 %v598, %v604
          %s607 = sld [smem:[#allocation5 + $0x20]]
          %v608 = vld [vmem:[#allocation4 + $0x4] sm:$0xff]
          %v609 = vld [vmem:[#allocation4 + $0xc] sm:$0xff]
          %v610 = vstv %s607
          %v611 = vmul.f32 %v610, %v608
          %v612 = vmul.f32 %v610, %v609
          %v613 = vadd.f32 %v605, %v611
          %v614 = vadd.f32 %v606, %v612
          %s615 = sld [smem:[#allocation5 + $0x27]]
          %v616 = vld [vmem:[#allocation4 + $0x5] sm:$0xff]
          %v617 = vld [vmem:[#allocation4 + $0xd] sm:$0xff]
          %v618 = vstv %s615
          %v619 = vmul.f32 %v618, %v616
          %v620 = vmul.f32 %v618, %v617
          %v621 = vadd.f32 %v613, %v619
          %v622 = vadd.f32 %v614, %v620
          %s623 = sld [smem:[#allocation5 + $0x2e]]
          %v624 = vld [vmem:[#allocation4 + $0x6] sm:$0xff]
          %v625 = vld [vmem:[#allocation4 + $0xe] sm:$0xff]
          %v626 = vstv %s623
          %v627 = vmul.f32 %v626, %v624
          %v628 = vmul.f32 %v626, %v625
          %v629 = vadd.f32 %v621, %v627
          %v630 = vadd.f32 %v622, %v628
          %631 = vrot.lane.b32.xlu0 %v293, 123
          %v632 = vpop.permute.xlu0 %631
          %633 = vrot.lane.b32.xlu0 %v294, 123
          %v634 = vpop.permute.xlu0 %633
          %635 = vrot.lane.b32.xlu0 %v295, 123
          %v636 = vpop.permute.xlu0 %635
          %640 = vst.msk [vmem:[#allocation4] sm:$0xff] %vm222, %v632
          %641 = vst.msk [vmem:[#allocation4 + $0x8] sm:$0xff] %vm222, %v634
          %642 = vst.msk [vmem:[#allocation4 + $0x10] sm:$0x3f] %vm298, %v636
          %s643 = sld [smem:[#allocation5 + $0x5]]
          %v644 = vld [vmem:[#allocation4] sm:$0xff]
          %v645 = vld [vmem:[#allocation4 + $0x8] sm:$0xff]
          %v646 = vstv %s643
          %v647 = vmul.f32 %v646, %v644
          %v648 = vmul.f32 %v646, %v645
          %v649 = vadd.f32 %v629, %v647
          %v650 = vadd.f32 %v630, %v648
          %s651 = sld [smem:[#allocation5 + $0xc]]
          %v652 = vld [vmem:[#allocation4 + $0x1] sm:$0xff]
          %v653 = vld [vmem:[#allocation4 + $0x9] sm:$0xff]
          %v654 = vstv %s651
          %v655 = vmul.f32 %v654, %v652
          %v656 = vmul.f32 %v654, %v653
          %v657 = vadd.f32 %v649, %v655
          %v658 = vadd.f32 %v650, %v656
          %s659 = sld [smem:[#allocation5 + $0x13]]
          %v660 = vld [vmem:[#allocation4 + $0x2] sm:$0xff]
          %v661 = vld [vmem:[#allocation4 + $0xa] sm:$0xff]
          %v662 = vstv %s659
          %v663 = vmul.f32 %v662, %v660
          %v664 = vmul.f32 %v662, %v661
          %v665 = vadd.f32 %v657, %v663
          %v666 = vadd.f32 %v658, %v664
          %s667 = sld [smem:[#allocation5 + $0x1a]]
          %v668 = vld [vmem:[#allocation4 + $0x3] sm:$0xff]
          %v669 = vld [vmem:[#allocation4 + $0xb] sm:$0xff]
          %v670 = vstv %s667
          %v671 = vmul.f32 %v670, %v668
          %v672 = vmul.f32 %v670, %v669
          %v673 = vadd.f32 %v665, %v671
          %v674 = vadd.f32 %v666, %v672
          %s675 = sld [smem:[#allocation5 + $0x21]]
          %v676 = vld [vmem:[#allocation4 + $0x4] sm:$0xff]
          %v677 = vld [vmem:[#allocation4 + $0xc] sm:$0xff]
          %v678 = vstv %s675
          %v679 = vmul.f32 %v678, %v676
          %v680 = vmul.f32 %v678, %v677
          %v681 = vadd.f32 %v673, %v679
          %v682 = vadd.f32 %v674, %v680
          %s683 = sld [smem:[#allocation5 + $0x28]]
          %v684 = vld [vmem:[#allocation4 + $0x5] sm:$0xff]
          %v685 = vld [vmem:[#allocation4 + $0xd] sm:$0xff]
          %v686 = vstv %s683
          %v687 = vmul.f32 %v686, %v684
          %v688 = vmul.f32 %v686, %v685
          %v689 = vadd.f32 %v681, %v687
          %v690 = vadd.f32 %v682, %v688
          %s691 = sld [smem:[#allocation5 + $0x2f]]
          %v692 = vld [vmem:[#allocation4 + $0x6] sm:$0xff]
          %v693 = vld [vmem:[#allocation4 + $0xe] sm:$0xff]
          %v694 = vstv %s691
          %v695 = vmul.f32 %v694, %v692
          %v696 = vmul.f32 %v694, %v693
          %v697 = vadd.f32 %v689, %v695
          %v698 = vadd.f32 %v690, %v696
          %699 = vrot.lane.b32.xlu0 %v293, 122
          %v700 = vpop.permute.xlu0 %699
          %701 = vrot.lane.b32.xlu0 %v294, 122
          %v702 = vpop.permute.xlu0 %701
          %703 = vrot.lane.b32.xlu0 %v295, 122
          %v704 = vpop.permute.xlu0 %703
          %708 = vst.msk [vmem:[#allocation4] sm:$0xff] %vm222, %v700
          %709 = vst.msk [vmem:[#allocation4 + $0x8] sm:$0xff] %vm222, %v702
          %710 = vst.msk [vmem:[#allocation4 + $0x10] sm:$0x3f] %vm298, %v704
          %s711 = sld [smem:[#allocation5 + $0x6]]
          %v712 = vld [vmem:[#allocation4] sm:$0xff]
          %v713 = vld [vmem:[#allocation4 + $0x8] sm:$0xff]
          %v714 = vstv %s711
          %v715 = vmul.f32 %v714, %v712
          %v716 = vmul.f32 %v714, %v713
          %v717 = vadd.f32 %v697, %v715
          %v718 = vadd.f32 %v698, %v716
          %s719 = sld [smem:[#allocation5 + $0xd]]
          %v720 = vld [vmem:[#allocation4 + $0x1] sm:$0xff]
          %v721 = vld [vmem:[#allocation4 + $0x9] sm:$0xff]
          %v722 = vstv %s719
          %v723 = vmul.f32 %v722, %v720
          %v724 = vmul.f32 %v722, %v721
          %v725 = vadd.f32 %v717, %v723
          %v726 = vadd.f32 %v718, %v724
          %s727 = sld [smem:[#allocation5 + $0x14]]
          %v728 = vld [vmem:[#allocation4 + $0x2] sm:$0xff]
          %v729 = vld [vmem:[#allocation4 + $0xa] sm:$0xff]
          %v730 = vstv %s727
          %v731 = vmul.f32 %v730, %v728
          %v732 = vmul.f32 %v730, %v729
          %v733 = vadd.f32 %v725, %v731
          %v734 = vadd.f32 %v726, %v732
          %s735 = sld [smem:[#allocation5 + $0x1b]]
          %v736 = vld [vmem:[#allocation4 + $0x3] sm:$0xff]
          %v737 = vld [vmem:[#allocation4 + $0xb] sm:$0xff]
          %v738 = vstv %s735
          %v739 = vmul.f32 %v738, %v736
          %v740 = vmul.f32 %v738, %v737
          %v741 = vadd.f32 %v733, %v739
          %v742 = vadd.f32 %v734, %v740
          %s743 = sld [smem:[#allocation5 + $0x22]]
          %v744 = vld [vmem:[#allocation4 + $0x4] sm:$0xff]
          %v745 = vld [vmem:[#allocation4 + $0xc] sm:$0xff]
          %v746 = vstv %s743
          %v747 = vmul.f32 %v746, %v744
          %v748 = vmul.f32 %v746, %v745
          %v749 = vadd.f32 %v741, %v747
          %v750 = vadd.f32 %v742, %v748
          %s751 = sld [smem:[#allocation5 + $0x29]]
          %v752 = vld [vmem:[#allocation4 + $0x5] sm:$0xff]
          %v753 = vld [vmem:[#allocation4 + $0xd] sm:$0xff]
          %v754 = vstv %s751
          %v755 = vmul.f32 %v754, %v752
          %v756 = vmul.f32 %v754, %v753
          %v757 = vadd.f32 %v749, %v755
          %v758 = vadd.f32 %v750, %v756
          %s759 = sld [smem:[#allocation5 + $0x30]]
          %v760 = vld [vmem:[#allocation4 + $0x6] sm:$0xff]
          %v761 = vld [vmem:[#allocation4 + $0xe] sm:$0xff]
          %v762 = vstv %s759
          %v763 = vmul.f32 %v762, %v760
          %v764 = vmul.f32 %v762, %v761
          %v765 = vadd.f32 %v757, %v763
          %v766 = vadd.f32 %v758, %v764
          %v767 = vld [vmem:[%s290] sm:$0xff]
          %v768 = vld [vmem:[%s290 + $0x8] sm:$0xff]
          %v769 = vld [vmem:[%s290 + $0x10] sm:$0x3f]
          %770 = vst.msk [vmem:[#allocation4] sm:$0xff] %vm222, %v767
          %771 = vst.msk [vmem:[#allocation4 + $0x8] sm:$0xff] %vm222, %v768
          %772 = vst.msk [vmem:[#allocation4 + $0x10] sm:$0x3f] %vm298, %v769
          %s773 = sld [smem:[#allocation5 + $0x31]]
          %v774 = vld [vmem:[#allocation4] sm:$0xff]
          %v775 = vld [vmem:[#allocation4 + $0x8] sm:$0xff]
          %v776 = vstv %s773
          %v777 = vmul.f32 %v776, %v774
          %v778 = vmul.f32 %v776, %v775
          %v779 = vadd.f32 %v765, %v777
          %v780 = vadd.f32 %v766, %v778
          %s781 = sld [smem:[#allocation5 + $0x38]]
          %v782 = vld [vmem:[#allocation4 + $0x1] sm:$0xff]
          %v783 = vld [vmem:[#allocation4 + $0x9] sm:$0xff]
          %v784 = vstv %s781
          %v785 = vmul.f32 %v784, %v782
          %v786 = vmul.f32 %v784, %v783
          %v787 = vadd.f32 %v779, %v785
          %v788 = vadd.f32 %v780, %v786
          %s789 = sld [smem:[#allocation5 + $0x3f]]
          %v790 = vld [vmem:[#allocation4 + $0x2] sm:$0xff]
          %v791 = vld [vmem:[#allocation4 + $0xa] sm:$0xff]
          %v792 = vstv %s789
          %v793 = vmul.f32 %v792, %v790
          %v794 = vmul.f32 %v792, %v791
          %v795 = vadd.f32 %v787, %v793
          %v796 = vadd.f32 %v788, %v794
          %s797 = sld [smem:[#allocation5 + $0x46]]
          %v798 = vld [vmem:[#allocation4 + $0x3] sm:$0xff]
          %v799 = vld [vmem:[#allocation4 + $0xb] sm:$0xff]
          %v800 = vstv %s797
          %v801 = vmul.f32 %v800, %v798
          %v802 = vmul.f32 %v800, %v799
          %v803 = vadd.f32 %v795, %v801
          %v804 = vadd.f32 %v796, %v802
          %s805 = sld [smem:[#allocation5 + $0x4d]]
          %v806 = vld [vmem:[#allocation4 + $0x4] sm:$0xff]
          %v807 = vld [vmem:[#allocation4 + $0xc] sm:$0xff]
          %v808 = vstv %s805
          %v809 = vmul.f32 %v808, %v806
          %v810 = vmul.f32 %v808, %v807
          %v811 = vadd.f32 %v803, %v809
          %v812 = vadd.f32 %v804, %v810
          %s813 = sld [smem:[#allocation5 + $0x54]]
          %v814 = vld [vmem:[#allocation4 + $0x5] sm:$0xff]
          %v815 = vld [vmem:[#allocation4 + $0xd] sm:$0xff]
          %v816 = vstv %s813
          %v817 = vmul.f32 %v816, %v814
          %v818 = vmul.f32 %v816, %v815
          %v819 = vadd.f32 %v811, %v817
          %v820 = vadd.f32 %v812, %v818
          %s821 = sld [smem:[#allocation5 + $0x5b]]
          %v822 = vld [vmem:[#allocation4 + $0x6] sm:$0xff]
          %v823 = vld [vmem:[#allocation4 + $0xe] sm:$0xff]
          %v824 = vstv %s821
          %v825 = vmul.f32 %v824, %v822
          %v826 = vmul.f32 %v824, %v823
          %v827 = vadd.f32 %v819, %v825
          %v828 = vadd.f32 %v820, %v826
          %832 = vrot.lane.b32.xlu0 %v767, 127
          %v833 = vpop.permute.xlu0 %832
          %834 = vrot.lane.b32.xlu0 %v768, 127
          %v835 = vpop.permute.xlu0 %834
          %836 = vrot.lane.b32.xlu0 %v769, 127
          %v837 = vpop.permute.xlu0 %836
          %841 = vst.msk [vmem:[#allocation4] sm:$0xff] %vm222, %v833
          %842 = vst.msk [vmem:[#allocation4 + $0x8] sm:$0xff] %vm222, %v835
          %843 = vst.msk [vmem:[#allocation4 + $0x10] sm:$0x3f] %vm298, %v837
          %s844 = sld [smem:[#allocation5 + $0x32]]
          %v845 = vld [vmem:[#allocation4] sm:$0xff]
          %v846 = vld [vmem:[#allocation4 + $0x8] sm:$0xff]
          %v847 = vstv %s844
          %v848 = vmul.f32 %v847, %v845
          %v849 = vmul.f32 %v847, %v846
          %v850 = vadd.f32 %v827, %v848
          %v851 = vadd.f32 %v828, %v849
          %s852 = sld [smem:[#allocation5 + $0x39]]
          %v853 = vld [vmem:[#allocation4 + $0x1] sm:$0xff]
          %v854 = vld [vmem:[#allocation4 + $0x9] sm:$0xff]
          %v855 = vstv %s852
          %v856 = vmul.f32 %v855, %v853
          %v857 = vmul.f32 %v855, %v854
          %v858 = vadd.f32 %v850, %v856
          %v859 = vadd.f32 %v851, %v857
          %s860 = sld [smem:[#allocation5 + $0x40]]
          %v861 = vld [vmem:[#allocation4 + $0x2] sm:$0xff]
          %v862 = vld [vmem:[#allocation4 + $0xa] sm:$0xff]
          %v863 = vstv %s860
          %v864 = vmul.f32 %v863, %v861
          %v865 = vmul.f32 %v863, %v862
          %v866 = vadd.f32 %v858, %v864
          %v867 = vadd.f32 %v859, %v865
          %s868 = sld [smem:[#allocation5 + $0x47]]
          %v869 = vld [vmem:[#allocation4 + $0x3] sm:$0xff]
          %v870 = vld [vmem:[#allocation4 + $0xb] sm:$0xff]
          %v871 = vstv %s868
          %v872 = vmul.f32 %v871, %v869
          %v873 = vmul.f32 %v871, %v870
          %v874 = vadd.f32 %v866, %v872
          %v875 = vadd.f32 %v867, %v873
          %s876 = sld [smem:[#allocation5 + $0x4e]]
          %v877 = vld [vmem:[#allocation4 + $0x4] sm:$0xff]
          %v878 = vld [vmem:[#allocation4 + $0xc] sm:$0xff]
          %v879 = vstv %s876
          %v880 = vmul.f32 %v879, %v877
          %v881 = vmul.f32 %v879, %v878
          %v882 = vadd.f32 %v874, %v880
          %v883 = vadd.f32 %v875, %v881
          %s884 = sld [smem:[#allocation5 + $0x55]]
          %v885 = vld [vmem:[#allocation4 + $0x5] sm:$0xff]
          %v886 = vld [vmem:[#allocation4 + $0xd] sm:$0xff]
          %v887 = vstv %s884
          %v888 = vmul.f32 %v887, %v885
          %v889 = vmul.f32 %v887, %v886
          %v890 = vadd.f32 %v882, %v888
          %v891 = vadd.f32 %v883, %v889
          %s892 = sld [smem:[#allocation5 + $0x5c]]
          %v893 = vld [vmem:[#allocation4 + $0x6] sm:$0xff]
          %v894 = vld [vmem:[#allocation4 + $0xe] sm:$0xff]
          %v895 = vstv %s892
          %v896 = vmul.f32 %v895, %v893
          %v897 = vmul.f32 %v895, %v894
          %v898 = vadd.f32 %v890, %v896
          %v899 = vadd.f32 %v891, %v897
          %900 = vrot.lane.b32.xlu0 %v767, 126
          %v901 = vpop.permute.xlu0 %900
          %902 = vrot.lane.b32.xlu0 %v768, 126
          %v903 = vpop.permute.xlu0 %902
          %904 = vrot.lane.b32.xlu0 %v769, 126
          %v905 = vpop.permute.xlu0 %904
          %909 = vst.msk [vmem:[#allocation4] sm:$0xff] %vm222, %v901
          %910 = vst.msk [vmem:[#allocation4 + $0x8] sm:$0xff] %vm222, %v903
          %911 = vst.msk [vmem:[#allocation4 + $0x10] sm:$0x3f] %vm298, %v905
          %s912 = sld [smem:[#allocation5 + $0x33]]
          %v913 = vld [vmem:[#allocation4] sm:$0xff]
          %v914 = vld [vmem:[#allocation4 + $0x8] sm:$0xff]
          %v915 = vstv %s912
          %v916 = vmul.f32 %v915, %v913
          %v917 = vmul.f32 %v915, %v914
          %v918 = vadd.f32 %v898, %v916
          %v919 = vadd.f32 %v899, %v917
          %s920 = sld [smem:[#allocation5 + $0x3a]]
          %v921 = vld [vmem:[#allocation4 + $0x1] sm:$0xff]
          %v922 = vld [vmem:[#allocation4 + $0x9] sm:$0xff]
          %v923 = vstv %s920
          %v924 = vmul.f32 %v923, %v921
          %v925 = vmul.f32 %v923, %v922
          %v926 = vadd.f32 %v918, %v924
          %v927 = vadd.f32 %v919, %v925
          %s928 = sld [smem:[#allocation5 + $0x41]]
          %v929 = vld [vmem:[#allocation4 + $0x2] sm:$0xff]
          %v930 = vld [vmem:[#allocation4 + $0xa] sm:$0xff]
          %v931 = vstv %s928
          %v932 = vmul.f32 %v931, %v929
          %v933 = vmul.f32 %v931, %v930
          %v934 = vadd.f32 %v926, %v932
          %v935 = vadd.f32 %v927, %v933
          %s936 = sld [smem:[#allocation5 + $0x48]]
          %v937 = vld [vmem:[#allocation4 + $0x3] sm:$0xff]
          %v938 = vld [vmem:[#allocation4 + $0xb] sm:$0xff]
          %v939 = vstv %s936
          %v940 = vmul.f32 %v939, %v937
          %v941 = vmul.f32 %v939, %v938
          %v942 = vadd.f32 %v934, %v940
          %v943 = vadd.f32 %v935, %v941
          %s944 = sld [smem:[#allocation5 + $0x4f]]
          %v945 = vld [vmem:[#allocation4 + $0x4] sm:$0xff]
          %v946 = vld [vmem:[#allocation4 + $0xc] sm:$0xff]
          %v947 = vstv %s944
          %v948 = vmul.f32 %v947, %v945
          %v949 = vmul.f32 %v947, %v946
          %v950 = vadd.f32 %v942, %v948
          %v951 = vadd.f32 %v943, %v949
          %s952 = sld [smem:[#allocation5 + $0x56]]
          %v953 = vld [vmem:[#allocation4 + $0x5] sm:$0xff]
          %v954 = vld [vmem:[#allocation4 + $0xd] sm:$0xff]
          %v955 = vstv %s952
          %v956 = vmul.f32 %v955, %v953
          %v957 = vmul.f32 %v955, %v954
          %v958 = vadd.f32 %v950, %v956
          %v959 = vadd.f32 %v951, %v957
          %s960 = sld [smem:[#allocation5 + $0x5d]]
          %v961 = vld [vmem:[#allocation4 + $0x6] sm:$0xff]
          %v962 = vld [vmem:[#allocation4 + $0xe] sm:$0xff]
          %v963 = vstv %s960
          %v964 = vmul.f32 %v963, %v961
          %v965 = vmul.f32 %v963, %v962
          %v966 = vadd.f32 %v958, %v964
          %v967 = vadd.f32 %v959, %v965
          %968 = vrot.lane.b32.xlu0 %v767, 125
          %v969 = vpop.permute.xlu0 %968
          %970 = vrot.lane.b32.xlu0 %v768, 125
          %v971 = vpop.permute.xlu0 %970
          %972 = vrot.lane.b32.xlu0 %v769, 125
          %v973 = vpop.permute.xlu0 %972
          %977 = vst.msk [vmem:[#allocation4] sm:$0xff] %vm222, %v969
          %978 = vst.msk [vmem:[#allocation4 + $0x8] sm:$0xff] %vm222, %v971
          %979 = vst.msk [vmem:[#allocation4 + $0x10] sm:$0x3f] %vm298, %v973
          %s980 = sld [smem:[#allocation5 + $0x34]]
          %v981 = vld [vmem:[#allocation4] sm:$0xff]
          %v982 = vld [vmem:[#allocation4 + $0x8] sm:$0xff]
          %v983 = vstv %s980
          %v984 = vmul.f32 %v983, %v981
          %v985 = vmul.f32 %v983, %v982
          %v986 = vadd.f32 %v966, %v984
          %v987 = vadd.f32 %v967, %v985
          %s988 = sld [smem:[#allocation5 + $0x3b]]
          %v989 = vld [vmem:[#allocation4 + $0x1] sm:$0xff]
          %v990 = vld [vmem:[#allocation4 + $0x9] sm:$0xff]
          %v991 = vstv %s988
          %v992 = vmul.f32 %v991, %v989
          %v993 = vmul.f32 %v991, %v990
          %v994 = vadd.f32 %v986, %v992
          %v995 = vadd.f32 %v987, %v993
          %s996 = sld [smem:[#allocation5 + $0x42]]
          %v997 = vld [vmem:[#allocation4 + $0x2] sm:$0xff]
          %v998 = vld [vmem:[#allocation4 + $0xa] sm:$0xff]
          %v999 = vstv %s996
          %v1000 = vmul.f32 %v999, %v997
          %v1001 = vmul.f32 %v999, %v998
          %v1002 = vadd.f32 %v994, %v1000
          %v1003 = vadd.f32 %v995, %v1001
          %s1004 = sld [smem:[#allocation5 + $0x49]]
          %v1005 = vld [vmem:[#allocation4 + $0x3] sm:$0xff]
          %v1006 = vld [vmem:[#allocation4 + $0xb] sm:$0xff]
          %v1007 = vstv %s1004
          %v1008 = vmul.f32 %v1007, %v1005
          %v1009 = vmul.f32 %v1007, %v1006
          %v1010 = vadd.f32 %v1002, %v1008
          %v1011 = vadd.f32 %v1003, %v1009
          %s1012 = sld [smem:[#allocation5 + $0x50]]
          %v1013 = vld [vmem:[#allocation4 + $0x4] sm:$0xff]
          %v1014 = vld [vmem:[#allocation4 + $0xc] sm:$0xff]
          %v1015 = vstv %s1012
          %v1016 = vmul.f32 %v1015, %v1013
          %v1017 = vmul.f32 %v1015, %v1014
          %v1018 = vadd.f32 %v1010, %v1016
          %v1019 = vadd.f32 %v1011, %v1017
          %s1020 = sld [smem:[#allocation5 + $0x57]]
          %v1021 = vld [vmem:[#allocation4 + $0x5] sm:$0xff]
          %v1022 = vld [vmem:[#allocation4 + $0xd] sm:$0xff]
          %v1023 = vstv %s1020
          %v1024 = vmul.f32 %v1023, %v1021
          %v1025 = vmul.f32 %v1023, %v1022
          %v1026 = vadd.f32 %v1018, %v1024
          %v1027 = vadd.f32 %v1019, %v1025
          %s1028 = sld [smem:[#allocation5 + $0x5e]]
          %v1029 = vld [vmem:[#allocation4 + $0x6] sm:$0xff]
          %v1030 = vld [vmem:[#allocation4 + $0xe] sm:$0xff]
          %v1031 = vstv %s1028
          %v1032 = vmul.f32 %v1031, %v1029
          %v1033 = vmul.f32 %v1031, %v1030
          %v1034 = vadd.f32 %v1026, %v1032
          %v1035 = vadd.f32 %v1027, %v1033
          %1036 = vrot.lane.b32.xlu0 %v767, 124
          %v1037 = vpop.permute.xlu0 %1036
          %1038 = vrot.lane.b32.xlu0 %v768, 124
          %v1039 = vpop.permute.xlu0 %1038
          %1040 = vrot.lane.b32.xlu0 %v769, 124
          %v1041 = vpop.permute.xlu0 %1040
          %1045 = vst.msk [vmem:[#allocation4] sm:$0xff] %vm222, %v1037
          %1046 = vst.msk [vmem:[#allocation4 + $0x8] sm:$0xff] %vm222, %v1039
          %1047 = vst.msk [vmem:[#allocation4 + $0x10] sm:$0x3f] %vm298, %v1041
          %s1048 = sld [smem:[#allocation5 + $0x35]]
          %v1049 = vld [vmem:[#allocation4] sm:$0xff]
          %v1050 = vld [vmem:[#allocation4 + $0x8] sm:$0xff]
          %v1051 = vstv %s1048
          %v1052 = vmul.f32 %v1051, %v1049
          %v1053 = vmul.f32 %v1051, %v1050
          %v1054 = vadd.f32 %v1034, %v1052
          %v1055 = vadd.f32 %v1035, %v1053
          %s1056 = sld [smem:[#allocation5 + $0x3c]]
          %v1057 = vld [vmem:[#allocation4 + $0x1] sm:$0xff]
          %v1058 = vld [vmem:[#allocation4 + $0x9] sm:$0xff]
          %v1059 = vstv %s1056
          %v1060 = vmul.f32 %v1059, %v1057
          %v1061 = vmul.f32 %v1059, %v1058
          %v1062 = vadd.f32 %v1054, %v1060
          %v1063 = vadd.f32 %v1055, %v1061
          %s1064 = sld [smem:[#allocation5 + $0x43]]
          %v1065 = vld [vmem:[#allocation4 + $0x2] sm:$0xff]
          %v1066 = vld [vmem:[#allocation4 + $0xa] sm:$0xff]
          %v1067 = vstv %s1064
          %v1068 = vmul.f32 %v1067, %v1065
          %v1069 = vmul.f32 %v1067, %v1066
          %v1070 = vadd.f32 %v1062, %v1068
          %v1071 = vadd.f32 %v1063, %v1069
          %s1072 = sld [smem:[#allocation5 + $0x4a]]
          %v1073 = vld [vmem:[#allocation4 + $0x3] sm:$0xff]
          %v1074 = vld [vmem:[#allocation4 + $0xb] sm:$0xff]
          %v1075 = vstv %s1072
          %v1076 = vmul.f32 %v1075, %v1073
          %v1077 = vmul.f32 %v1075, %v1074
          %v1078 = vadd.f32 %v1070, %v1076
          %v1079 = vadd.f32 %v1071, %v1077
          %s1080 = sld [smem:[#allocation5 + $0x51]]
          %v1081 = vld [vmem:[#allocation4 + $0x4] sm:$0xff]
          %v1082 = vld [vmem:[#allocation4 + $0xc] sm:$0xff]
          %v1083 = vstv %s1080
          %v1084 = vmul.f32 %v1083, %v1081
          %v1085 = vmul.f32 %v1083, %v1082
          %v1086 = vadd.f32 %v1078, %v1084
          %v1087 = vadd.f32 %v1079, %v1085
          %s1088 = sld [smem:[#allocation5 + $0x58]]
          %v1089 = vld [vmem:[#allocation4 + $0x5] sm:$0xff]
          %v1090 = vld [vmem:[#allocation4 + $0xd] sm:$0xff]
          %v1091 = vstv %s1088
          %v1092 = vmul.f32 %v1091, %v1089
          %v1093 = vmul.f32 %v1091, %v1090
          %v1094 = vadd.f32 %v1086, %v1092
          %v1095 = vadd.f32 %v1087, %v1093
          %s1096 = sld [smem:[#allocation5 + $0x5f]]
          %v1097 = vld [vmem:[#allocation4 + $0x6] sm:$0xff]
          %v1098 = vld [vmem:[#allocation4 + $0xe] sm:$0xff]
          %v1099 = vstv %s1096
          %v1100 = vmul.f32 %v1099, %v1097
          %v1101 = vmul.f32 %v1099, %v1098
          %v1102 = vadd.f32 %v1094, %v1100
          %v1103 = vadd.f32 %v1095, %v1101
          %1104 = vrot.lane.b32.xlu0 %v767, 123
          %v1105 = vpop.permute.xlu0 %1104
          %1106 = vrot.lane.b32.xlu0 %v768, 123
          %v1107 = vpop.permute.xlu0 %1106
          %1108 = vrot.lane.b32.xlu0 %v769, 123
          %v1109 = vpop.permute.xlu0 %1108
          %1113 = vst.msk [vmem:[#allocation4] sm:$0xff] %vm222, %v1105
          %1114 = vst.msk [vmem:[#allocation4 + $0x8] sm:$0xff] %vm222, %v1107
          %1115 = vst.msk [vmem:[#allocation4 + $0x10] sm:$0x3f] %vm298, %v1109
          %s1116 = sld [smem:[#allocation5 + $0x36]]
          %v1117 = vld [vmem:[#allocation4] sm:$0xff]
          %v1118 = vld [vmem:[#allocation4 + $0x8] sm:$0xff]
          %v1119 = vstv %s1116
          %v1120 = vmul.f32 %v1119, %v1117
          %v1121 = vmul.f32 %v1119, %v1118
          %v1122 = vadd.f32 %v1102, %v1120
          %v1123 = vadd.f32 %v1103, %v1121
          %s1124 = sld [smem:[#allocation5 + $0x3d]]
          %v1125 = vld [vmem:[#allocation4 + $0x1] sm:$0xff]
          %v1126 = vld [vmem:[#allocation4 + $0x9] sm:$0xff]
          %v1127 = vstv %s1124
          %v1128 = vmul.f32 %v1127, %v1125
          %v1129 = vmul.f32 %v1127, %v1126
          %v1130 = vadd.f32 %v1122, %v1128
          %v1131 = vadd.f32 %v1123, %v1129
          %s1132 = sld [smem:[#allocation5 + $0x44]]
          %v1133 = vld [vmem:[#allocation4 + $0x2] sm:$0xff]
          %v1134 = vld [vmem:[#allocation4 + $0xa] sm:$0xff]
          %v1135 = vstv %s1132
          %v1136 = vmul.f32 %v1135, %v1133
          %v1137 = vmul.f32 %v1135, %v1134
          %v1138 = vadd.f32 %v1130, %v1136
          %v1139 = vadd.f32 %v1131, %v1137
          %s1140 = sld [smem:[#allocation5 + $0x4b]]
          %v1141 = vld [vmem:[#allocation4 + $0x3] sm:$0xff]
          %v1142 = vld [vmem:[#allocation4 + $0xb] sm:$0xff]
          %v1143 = vstv %s1140
          %v1144 = vmul.f32 %v1143, %v1141
          %v1145 = vmul.f32 %v1143, %v1142
          %v1146 = vadd.f32 %v1138, %v1144
          %v1147 = vadd.f32 %v1139, %v1145
          %s1148 = sld [smem:[#allocation5 + $0x52]]
          %v1149 = vld [vmem:[#allocation4 + $0x4] sm:$0xff]
          %v1150 = vld [vmem:[#allocation4 + $0xc] sm:$0xff]
          %v1151 = vstv %s1148
          %v1152 = vmul.f32 %v1151, %v1149
          %v1153 = vmul.f32 %v1151, %v1150
          %v1154 = vadd.f32 %v1146, %v1152
          %v1155 = vadd.f32 %v1147, %v1153
          %s1156 = sld [smem:[#allocation5 + $0x59]]
          %v1157 = vld [vmem:[#allocation4 + $0x5] sm:$0xff]
          %v1158 = vld [vmem:[#allocation4 + $0xd] sm:$0xff]
          %v1159 = vstv %s1156
          %v1160 = vmul.f32 %v1159, %v1157
          %v1161 = vmul.f32 %v1159, %v1158
          %v1162 = vadd.f32 %v1154, %v1160
          %v1163 = vadd.f32 %v1155, %v1161
          %s1164 = sld [smem:[#allocation5 + $0x60]]
          %v1165 = vld [vmem:[#allocation4 + $0x6] sm:$0xff]
          %v1166 = vld [vmem:[#allocation4 + $0xe] sm:$0xff]
          %v1167 = vstv %s1164
          %v1168 = vmul.f32 %v1167, %v1165
          %v1169 = vmul.f32 %v1167, %v1166
          %v1170 = vadd.f32 %v1162, %v1168
          %v1171 = vadd.f32 %v1163, %v1169
          %1172 = vrot.lane.b32.xlu0 %v767, 122
          %v1173 = vpop.permute.xlu0 %1172
          %1174 = vrot.lane.b32.xlu0 %v768, 122
          %v1175 = vpop.permute.xlu0 %1174
          %1176 = vrot.lane.b32.xlu0 %v769, 122
          %v1177 = vpop.permute.xlu0 %1176
          %1181 = vst.msk [vmem:[#allocation4] sm:$0xff] %vm222, %v1173
          %1182 = vst.msk [vmem:[#allocation4 + $0x8] sm:$0xff] %vm222, %v1175
          %1183 = vst.msk [vmem:[#allocation4 + $0x10] sm:$0x3f] %vm298, %v1177
          %s1184 = sld [smem:[#allocation5 + $0x37]]
          %v1185 = vld [vmem:[#allocation4] sm:$0xff]
          %v1186 = vld [vmem:[#allocation4 + $0x8] sm:$0xff]
          %v1187 = vstv %s1184
          %v1188 = vmul.f32 %v1187, %v1185
          %v1189 = vmul.f32 %v1187, %v1186
          %v1190 = vadd.f32 %v1170, %v1188
          %v1191 = vadd.f32 %v1171, %v1189
          %s1192 = sld [smem:[#allocation5 + $0x3e]]
          %v1193 = vld [vmem:[#allocation4 + $0x1] sm:$0xff]
          %v1194 = vld [vmem:[#allocation4 + $0x9] sm:$0xff]
          %v1195 = vstv %s1192
          %v1196 = vmul.f32 %v1195, %v1193
          %v1197 = vmul.f32 %v1195, %v1194
          %v1198 = vadd.f32 %v1190, %v1196
          %v1199 = vadd.f32 %v1191, %v1197
          %s1200 = sld [smem:[#allocation5 + $0x45]]
          %v1201 = vld [vmem:[#allocation4 + $0x2] sm:$0xff]
          %v1202 = vld [vmem:[#allocation4 + $0xa] sm:$0xff]
          %v1203 = vstv %s1200
          %v1204 = vmul.f32 %v1203, %v1201
          %v1205 = vmul.f32 %v1203, %v1202
          %v1206 = vadd.f32 %v1198, %v1204
          %v1207 = vadd.f32 %v1199, %v1205
          %s1208 = sld [smem:[#allocation5 + $0x4c]]
          %v1209 = vld [vmem:[#allocation4 + $0x3] sm:$0xff]
          %v1210 = vld [vmem:[#allocation4 + $0xb] sm:$0xff]
          %v1211 = vstv %s1208
          %v1212 = vmul.f32 %v1211, %v1209
          %v1213 = vmul.f32 %v1211, %v1210
          %v1214 = vadd.f32 %v1206, %v1212
          %v1215 = vadd.f32 %v1207, %v1213
          %s1216 = sld [smem:[#allocation5 + $0x53]]
          %v1217 = vld [vmem:[#allocation4 + $0x4] sm:$0xff]
          %v1218 = vld [vmem:[#allocation4 + $0xc] sm:$0xff]
          %v1219 = vstv %s1216
          %v1220 = vmul.f32 %v1219, %v1217
          %v1221 = vmul.f32 %v1219, %v1218
          %v1222 = vadd.f32 %v1214, %v1220
          %v1223 = vadd.f32 %v1215, %v1221
          %s1224 = sld [smem:[#allocation5 + $0x5a]]
          %v1225 = vld [vmem:[#allocation4 + $0x5] sm:$0xff]
          %v1226 = vld [vmem:[#allocation4 + $0xd] sm:$0xff]
          %v1227 = vstv %s1224
          %v1228 = vmul.f32 %v1227, %v1225
          %v1229 = vmul.f32 %v1227, %v1226
          %v1230 = vadd.f32 %v1222, %v1228
          %v1231 = vadd.f32 %v1223, %v1229
          %s1232 = sld [smem:[#allocation5 + $0x61]]
          %v1233 = vld [vmem:[#allocation4 + $0x6] sm:$0xff]
          %v1234 = vld [vmem:[#allocation4 + $0xe] sm:$0xff]
          %v1235 = vstv %s1232
          %v1236 = vmul.f32 %v1235, %v1233
          %v1237 = vmul.f32 %v1235, %v1234
          %v1238 = vadd.f32 %v1230, %v1236
          %v1239 = vadd.f32 %v1231, %v1237
          %v1240 = vxor.u32 %v1238, 2147483648
          %v1241 = vxor.u32 %v1239, 2147483648
          %v1242 = vmul.f32 %v1240, 1.442695
          %v1243 = vpow.pop %v1242
          %v1244 = vmul.f32 %v1241, 1.442695
          %v1245 = vpow.pop %v1244
          %v1246 = vadd.f32 %v1243, 1.0
          %v1247 = vadd.f32 %v1245, 1.0
          %v1248 = vrcp.pop %v1246
          %v1249 = vmul.f32 1.0, %v1248
          %v1250 = vrcp.pop %v1247
          %v1251 = vmul.f32 1.0, %v1250
          %1252 = vst.msk [vmem:[%s188] sm:$0xff] %vm222, %v1249
          %1253 = vst.msk [vmem:[%s188 + $0x8] sm:$0xff] %vm222, %v1251
        $region44: #{spatial_attention.2} parent=27 // pred_fallthru
          _
        %p1254 = scmp.lt.s32.totalorder %s18, 1
        %s1255 = scalar_select %p1254, %s18, 1
        %s1256 = smul.addr %s1255, 2
        %s1257 = smul.addr %s1256, 8
        %s1258 = scalar_lea.vmem %s2, %s1257
        // Predicated region
        $region45: #{spatial_attention.2} parent=27 // pred_check
          %p1259 = pneg %p93
        $region46: #{spatial_attention.2} parent=27 // pred_check_branch
          %1261 = sbr.rel (%p1259) target = $region48
        $region47: #{spatial_attention.2} parent=27 // pred_region
          _
        $region48: #{spatial_attention.2} parent=27 // pred_fallthru
          _
      $region28: #{spatial_attention.2} parent=5 // pred_fallthru
        _
      %p1262 = scmp.le.s32.totalorder 2, %s9
      // Predicated region
      $region49: #{spatial_attention.2} parent=5 // pred_check
        %p1263 = pneg %p1262
      $region50: #{spatial_attention.2} parent=5 // pred_check_branch
        %1265 = sbr.rel (%p1263) target = $region52
      $region51: #{spatial_attention.2} parent=5 // pred_region
        %s1266 = ssub.s32 %s9, 2
        // Predicated region
        $region53: #{spatial_attention.2} parent=51 // pred_check
          %p1267 = pneg %p99
        $region54: #{spatial_attention.2} parent=51 // pred_check_branch
          %1269 = sbr.rel (%p1267) target = $region56
        $region55: #{spatial_attention.2} parent=51 // pred_region
          %p1270 = scmp.lt.s32.totalorder %s20, 1
          %s1271 = scalar_select %p1270, %s20, 1
          %s1272 = smul.addr %s1271, 2
          %s1273 = smul.addr %s1272, 8
          %s1274 = scalar_lea.vmem %s2, %s1273
        $region56: #{spatial_attention.2} parent=51 // pred_fallthru
          _
      $region52: #{spatial_attention.2} parent=5 // pred_fallthru
        _
    $region6: #{spatial_attention.2} parent=1 // loop_footer
      %s13 = sadd.s32 1, %s9
    $region7: #{spatial_attention.2} parent=1 // loop_footer_branch
      %8 = sbr.rel target = $region3
    $region8: #{spatial_attention.2} parent=1 // loop_exit
      _
    %1275 = vsyncpa [#allocation6], 1
    %s1276 = scalar_lea.sflag [#allocation6], 1
    %1277 = vsyncpa %s1276, 1

</llo_original>
